<compile_context>
chip_gen: v6e
topology: v6e:2x2x1
jax: 0.10.0
libtpu: 0.0.40
codegen_flags: <defaults>
</compile_context>

<pallas_src>
import functools

import jax
import jax.numpy as jnp
from jax.experimental import pallas as pl
from jax.experimental.pallas import tpu as pltpu

_EPS = 1e-5
_LANE = 128


def _round_up(x, m):
    return ((x + m - 1) // m) * m


def _bottleneck_kernel(x_ref, w1_ref, b1_ref, w2_ref, b2_ref, w3_ref, b3_ref,
                       out_ref, *, has_proj, ho, wo):
    """Fused bottleneck block on a block of whole images, spatial dims flattened to rows.

    x_ref  : (M, Cin_p)                  M = B_blk*Ho*Wo, channel-padded, compute dtype
    w1_ref : (Cin_p, Cmid_p[+Cout_p])    1x1 conv, BN1 scale folded; projection-shortcut
                                         weights concatenated on the right when has_proj
    b1_ref : (1, Cmid_p[+Cout_p])  f32
    w2_ref : (3*Cmid_p, 3*Cmid_p)        3x3 conv as one matmul: rows grouped by kw
                                         (left/center/right), cols grouped by kh
    b2_ref : (1, Cmid_p)  f32
    w3_ref : (Cmid_p, Cout_p)            1x1 conv, BN3 scale folded
    b3_ref : (1, Cout_p)  f32
    out_ref: (M, Cout_p)
    """
    m_rows = x_ref.shape[0]
    cmid = w3_ref.shape[0]
    cdt = x_ref.dtype

    xm = x_ref[...]                                               # (M, Cin_p)

    # ---- conv1 (1x1) fused with the projection shortcut: one wide matmul ----
    h = jnp.dot(xm, w1_ref[...], preferred_element_type=jnp.float32) + b1_ref[...]
    if has_proj:
        h1 = jnp.maximum(h[:, :cmid], 0.0)                        # (M, Cmid_p) f32
        sc = h[:, cmid:]                                          # (M, Cout_p) f32
    else:
        h1 = jnp.maximum(h, 0.0)
        sc = xm                                                   # identity shortcut

    # ---- per-row spatial coordinates (f32 math to avoid vector int div/rem) ----
    m_f = jax.lax.broadcasted_iota(jnp.int32, (m_rows, 1), 0).astype(jnp.float32)
    row_all = jnp.floor(m_f / wo + 1e-3)                          # m // Wo
    col = m_f - row_all * wo                                      # m %  Wo
    img = jnp.floor(row_all / ho + 1e-3)
    row = row_all - img * ho                                      # row within the image
    first_col, last_col = col < 0.5, col > (wo - 1) - 0.5
    first_row, last_row = row < 0.5, row > (ho - 1) - 0.5

    # ---- conv2 (3x3, pad=1): roll-packed fat-K LHS, single matmul, rolled f32 result ----
    if wo > 1:
        left = jnp.where(first_col, 0.0, pltpu.roll(h1, 1, axis=0))
        right = jnp.where(last_col, 0.0, pltpu.roll(h1, m_rows - 1, axis=0))
    else:
        left = jnp.zeros_like(h1)
        right = jnp.zeros_like(h1)
    y = jnp.concatenate([left, h1, right], axis=-1).astype(cdt)   # (M, 3*Cmid_p)

    p = jnp.dot(y, w2_ref[...], preferred_element_type=jnp.float32)   # (M, 3*Cmid_p)
    acc = p[:, cmid:2 * cmid]                                      # kh = 1 (center row)
    if ho > 1:
        acc = acc + jnp.where(first_row, 0.0,
                              pltpu.roll(p[:, :cmid], wo, axis=0))            # kh = 0
        acc = acc + jnp.where(last_row, 0.0,
                              pltpu.roll(p[:, 2 * cmid:], m_rows - wo, axis=0))  # kh = 2
    h2 = jnp.maximum(acc + b2_ref[...], 0.0).astype(cdt)

    # ---- conv3 (1x1) + residual add + ReLU ----
    h3 = jnp.dot(h2, w3_ref[...], preferred_element_type=jnp.float32) + b3_ref[...]
    out_ref[...] = jnp.maximum(h3 + sc, 0.0).astype(out_ref.dtype)


def _fold_bn(bn):
    scale = bn["gamma"] / jnp.sqrt(bn["var"] + _EPS)
    bias = bn["beta"] - bn["mean"] * scale
    return scale.astype(jnp.float32), bias.astype(jnp.float32)


def _pad2(w, rows, cols):
    return jnp.pad(w, ((0, rows - w.shape[0]), (0, cols - w.shape[1])))


def _pad_bias(b, cols):
    return jnp.pad(b, (0, cols - b.shape[0])).reshape(1, cols).astype(jnp.float32)


def _choose_block_batch(n, m_img, widest_lanes, row_multiple):
    """Images per grid step: whole images, sublane-aligned row count, modest VMEM footprint."""
    target_rows = max(512, min(4096, (4 * 1024 * 1024) // (4 * widest_lanes)))
    valid = [b for b in range(1, n + 1) if n % b == 0 and (b * m_img) % row_multiple == 0]
    if not valid:
        return n                      # full-dim block is always a legal block shape
    fitting = [b for b in valid if b * m_img <= max(target_rows, m_img)]
    return max(fitting) if fitting else min(valid)


@functools.partial(jax.jit, static_argnames=("stride", "compute_dtype"))
def bottleneck_forward(x_nchw, params, stride=1, compute_dtype=jnp.bfloat16):
    """Bottleneck forward. NCHW in / NCHW out, PyTorch OIHW weights, eval-mode BN."""
    x = jnp.transpose(x_nchw, (0, 2, 3, 1))                      # NHWC
    if stride != 1:
        x = x[:, ::stride, ::stride, :]                          # strided 1x1 == 1x1 on strided input
    N, Ho, Wo, Cin = x.shape
    Cmid = params["w1"].shape[0]
    Cout = params["w3"].shape[0]
    has_proj = "wsc" in params
    if not has_proj:
        assert stride == 1 and Cin == Cout, "identity shortcut requires stride=1 and Cin==Cout"

    # Lane-dense channel padding (a no-op when already a 128-multiple).
    Cin_p, Cmid_p, Cout_p = (_round_up(c, _LANE) for c in (Cin, Cmid, Cout))

    s1, b1 = _fold_bn(params["bn1"])
    s2, b2 = _fold_bn(params["bn2"])
    s3, b3 = _fold_bn(params["bn3"])

    # conv1: BN scale folded in; projection shortcut fused as extra RHS columns so the
    # (M, Cin) LHS streams through the MXU only once.
    w1 = _pad2(params["w1"][:, :, 0, 0].T * s1[None, :], Cin_p, Cmid_p)
    b1v = _pad_bias(b1, Cmid_p)
    if has_proj:
        ssc, bsc = _fold_bn(params["bnsc"])
        wsc = _pad2(params["wsc"][:, :, 0, 0].T * ssc[None, :], Cin_p, Cout_p)
        w1 = jnp.concatenate([w1, wsc], axis=1)                  # (Cin_p, Cmid_p + Cout_p)
        b1v = jnp.concatenate([b1v, _pad_bias(bsc, Cout_p)], axis=1)
    w1 = w1.astype(compute_dtype)

    # conv2: one (3*Cmid_p, 3*Cmid_p) matrix; rows grouped by kw (left/center/right LHS
    # segments), columns grouped by kh (top/center/bottom output segments).
    w2 = jnp.concatenate(
        [jnp.concatenate(
            [_pad2(params["w2"][:, :, kh, kw].T * s2[None, :], Cmid_p, Cmid_p)
             for kh in range(3)], axis=1)
         for kw in range(3)], axis=0).astype(compute_dtype)
    b2v = _pad_bias(b2, Cmid_p)

    w3 = _pad2(params["w3"][:, :, 0, 0].T * s3[None, :], Cmid_p, Cout_p).astype(compute_dtype)
    b3v = _pad_bias(b3, Cout_p)

    # Flatten spatial dims into rows in HBM (free reshape); pad channels only if needed.
    xf = x.reshape(N * Ho * Wo, Cin)
    if Cin_p != Cin:
        xf = jnp.pad(xf, ((0, 0), (0, Cin_p - Cin)))
    xf = xf.astype(compute_dtype)

    itemsize = jnp.dtype(compute_dtype).itemsize
    M_img = Ho * Wo
    B_blk = _choose_block_batch(N, M_img, max(Cin_p, 3 * Cmid_p, Cout_p),
                                row_multiple=8 * (4 // itemsize))
    M_blk = B_blk * M_img
    n_blocks = (N * M_img) // M_blk

    vmem = pl.BlockSpec(memory_space=pltpu.MemorySpace.VMEM)     # weights: VMEM-resident
    in_specs = [pl.BlockSpec((M_blk, Cin_p), lambda n: (n, 0))] + [vmem] * 6
    # TODO(synk): pl.Buffered(3) on the x spec helps hide HBM latency on v5e/v6e for long
    #             grids; omitted here because the test grids are 1-2 steps long.

    n1 = Cmid_p + Cout_p if has_proj else Cmid_p
    flops_per_row = 2 * (Cin_p * n1 + (3 * Cmid_p) * (3 * Cmid_p) + Cmid_p * Cout_p)
    weight_bytes = sum(int(a.size) * a.dtype.itemsize for a in (w1, b1v, w2, b2v, w3, b3v))
    cost = pl.CostEstimate(
        flops=int(N * M_img * flops_per_row),
        transcendentals=0,
        bytes_accessed=int(xf.size + N * M_img * Cout_p) * itemsize + int(weight_bytes))

    out = pl.pallas_call(
        functools.partial(_bottleneck_kernel, has_proj=has_proj, ho=Ho, wo=Wo),
        out_shape=jax.ShapeDtypeStruct((N * M_img, Cout_p), compute_dtype),
        grid=(n_blocks,),
        in_specs=in_specs,
        out_specs=pl.BlockSpec((M_blk, Cout_p), lambda n: (n, 0)),
        compiler_params=pltpu.CompilerParams(
            dimension_semantics=("parallel",),      # megacore: split image blocks across TCs
            vmem_limit_bytes=64 * 1024 * 1024),
        cost_estimate=cost,
    )(xf, w1, b1v, w2, b2v, w3, b3v)

    if Cout_p != Cout:
        out = out[:, :Cout]
    out = out.reshape(N, Ho, Wo, Cout).astype(x_nchw.dtype)
    # TODO(synk): in an end-to-end NHWC model this slice/cast/transpose would fuse into the
    #             consumer; kept here only to match the PyTorch NCHW output contract.
    return jnp.transpose(out, (0, 3, 1, 2))


# ----------------------------- parameter setup -----------------------------

def _make_bn(key, c):
    k1, k2, k3, k4 = jax.random.split(key, 4)
    return {
        "gamma": 1.0 + 0.1 * jax.random.normal(k1, (c,), jnp.float32),
        "beta": 0.1 * jax.random.normal(k2, (c,), jnp.float32),
        "mean": 0.1 * jax.random.normal(k3, (c,), jnp.float32),
        "var": jax.random.uniform(k4, (c,), jnp.float32, minval=0.5, maxval=1.5),
    }


def init_params(key, inchannel, outchannel, stride):
    cmid = outchannel // 4
    ks = jax.random.split(key, 8)

    def w(k, shape, fan_in):
        return jax.random.normal(k, shape, jnp.float32) / jnp.sqrt(float(fan_in))

    p = {
        "w1": w(ks[0], (cmid, inchannel, 1, 1), inchannel),
        "bn1": _make_bn(ks[1], cmid),
        "w2": w(ks[2], (cmid, cmid, 3, 3), 9 * cmid),
        "bn2": _make_bn(ks[3], cmid),
        "w3": w(ks[4], (outchannel, cmid, 1, 1), cmid),
        "bn3": _make_bn(ks[5], outchannel),
    }
    if stride != 1 or inchannel != outchannel:
        p["wsc"] = w(ks[6], (outchannel, inchannel, 1, 1), inchannel)
        p["bnsc"] = _make_bn(ks[7], outchannel)
    return p


# ------------------------------ pure-JAX reference ------------------------------

def bottleneck_reference(x, p, stride):
    # In eval mode shortcut(x) is deterministic, so "out = left(x) + shortcut(x)".
    def conv(inp, w, s, pad):
        return jax.lax.conv_general_dilated(
            inp, w, (s, s), pad, dimension_numbers=("NCHW", "OIHW", "NCHW"))

    def bn(inp, b):
        g = b["gamma"].reshape(1, -1, 1, 1)
        be = b["beta"].reshape(1, -1, 1, 1)
        m = b["mean"].reshape(1, -1, 1, 1)
        v = b["var"].reshape(1, -1, 1, 1)
        return (inp - m) / jnp.sqrt(v + _EPS) * g + be

    h = jax.nn.relu(bn(conv(x, p["w1"], stride, "VALID"), p["bn1"]))
    h = jax.nn.relu(bn(conv(h, p["w2"], 1, ((1, 1), (1, 1))), p["bn2"]))
    h = bn(conv(h, p["w3"], 1, "VALID"), p["bn3"])
    sc = bn(conv(x, p["wsc"], stride, "VALID"), p["bnsc"]) if "wsc" in p else x
    return jax.nn.relu(h + sc)


if __name__ == "__main__":
    key = jax.random.PRNGKey(0)

    #          name               N  Cin   H   W  Cout s  dtype          rel_tol  abs_tol
    configs = [
        ("proj_stride1_f32",      2, 16,   8,  8, 32, 1, jnp.float32,   2e-3,    2e-2),
        ("proj_stride1_bf16",     2, 16,   8,  8, 32, 1, jnp.bfloat16,  3e-2,    2e-1),
        ("identity_stride1_bf16", 2, 32,   8,  8, 32, 1, jnp.bfloat16,  3e-2,    2e-1),
        ("proj_stride2_bf16",     2, 16,  16, 16, 32, 2, jnp.bfloat16,  3e-2,    2e-1),
    ]

    for i, (name, N, Cin, H, W, Cout, stride, cdt, rel_tol, abs_tol) in enumerate(configs):
        kx, kp = jax.random.split(jax.random.fold_in(key, i))
        x = jax.random.normal(kx, (N, Cin, H, W), jnp.float32)
        params = init_params(kp, Cin, Cout, stride)

        out = jax.block_until_ready(
            bottleneck_forward(x, params, stride=stride, compute_dtype=cdt))
        ref = bottleneck_reference(x, params, stride)

        assert out.shape == ref.shape, (name, out.shape, ref.shape)
        rel = float(jnp.linalg.norm(out - ref) / (jnp.linalg.norm(ref) + 1e-6))
        max_err = float(jnp.max(jnp.abs(out - ref)))
        assert rel < rel_tol and max_err < abs_tol, (name, rel, max_err)

    print("KERNEL_OK")
</pallas_src>

<mosaic_0001>
module attributes {stable_mosaic.version = 11 : i64} {
  func.func @_bottleneck_kernel(%arg0: i32, %arg1: memref<128x128xf32, #tpu.memory_space<vmem>>, %arg2: memref<128x256xf32, #tpu.memory_space<vmem>>, %arg3: memref<1x256xf32, #tpu.memory_space<vmem>>, %arg4: memref<384x384xf32, #tpu.memory_space<vmem>>, %arg5: memref<1x128xf32, #tpu.memory_space<vmem>>, %arg6: memref<128x128xf32, #tpu.memory_space<vmem>>, %arg7: memref<1x128xf32, #tpu.memory_space<vmem>>, %arg8: memref<128x128xf32, #tpu.memory_space<vmem>>) attributes {dimension_semantics = [#tpu.dimension_semantics<parallel>], iteration_bounds = array<i64: 1>, scalar_prefetch = 0 : i64, scratch_operands = 0 : i64, tpu.core_type = #tpu.core_type<tc>, window_params = [{transform_indices = @transform_0, window_bounds = array<i64: 128, 128>}, {pipeline_mode = #tpu.pipeline_mode<synchronous>, transform_indices = @transform_1, window_bounds = array<i64: 128, 256>}, {pipeline_mode = #tpu.pipeline_mode<synchronous>, transform_indices = @transform_2, window_bounds = array<i64: 1, 256>}, {pipeline_mode = #tpu.pipeline_mode<synchronous>, transform_indices = @transform_3, window_bounds = array<i64: 384, 384>}, {pipeline_mode = #tpu.pipeline_mode<synchronous>, transform_indices = @transform_4, window_bounds = array<i64: 1, 128>}, {pipeline_mode = #tpu.pipeline_mode<synchronous>, transform_indices = @transform_5, window_bounds = array<i64: 128, 128>}, {pipeline_mode = #tpu.pipeline_mode<synchronous>, transform_indices = @transform_6, window_bounds = array<i64: 1, 128>}, {transform_indices = @transform_7, window_bounds = array<i64: 128, 128>}]} {
    %c0 = arith.constant 0 : index
    %c0_0 = arith.constant 0 : index
    %0 = vector.load %arg1[%c0, %c0_0] : memref<128x128xf32, #tpu.memory_space<vmem>>, vector<128x128xf32>
    %c0_1 = arith.constant 0 : index
    %c0_2 = arith.constant 0 : index
    %1 = vector.load %arg2[%c0_1, %c0_2] : memref<128x256xf32, #tpu.memory_space<vmem>>, vector<128x256xf32>
    %cst = arith.constant dense<0.000000e+00> : vector<128x256xf32>
    %2 = tpu.matmul %0, %1, %cst {dimension_numbers = #tpu.dot_dimension_numbers<[1], [0], [0], [1], [0, 0, 1, 1], [], []>} : vector<128x128xf32>, vector<128x256xf32>, vector<128x256xf32> -> vector<128x256xf32>
    %c0_3 = arith.constant 0 : index
    %c0_4 = arith.constant 0 : index
    %3 = vector.load %arg3[%c0_3, %c0_4] : memref<1x256xf32, #tpu.memory_space<vmem>>, vector<1x256xf32>
    %4 = vector.broadcast %3 : vector<1x256xf32> to vector<128x256xf32>
    %5 = arith.addf %2, %4 : vector<128x256xf32>
    %6 = vector.extract_strided_slice %5 {offsets = [0, 0], sizes = [128, 128], strides = [1, 1]} : vector<128x256xf32> to vector<128x128xf32>
    %cst_5 = arith.constant 0.000000e+00 : f32
    %7 = vector.broadcast %cst_5 : f32 to vector<128x128xf32>
    %8 = arith.maximumf %6, %7 : vector<128x128xf32>
    %9 = vector.extract_strided_slice %5 {offsets = [0, 128], sizes = [128, 128], strides = [1, 1]} : vector<128x256xf32> to vector<128x128xf32>
    %10 = tpu.iota {dimensions = array<i32: 0>} : vector<128x1xi32>
    %11 = arith.sitofp %10 : vector<128x1xi32> to vector<128x1xf32>
    %cst_6 = arith.constant 8.000000e+00 : f32
    %12 = vector.broadcast %cst_6 : f32 to vector<128x1xf32>
    %13 = arith.divf %11, %12 : vector<128x1xf32>
    %cst_7 = arith.constant 1.000000e-03 : f32
    %14 = vector.broadcast %cst_7 : f32 to vector<128x1xf32>
    %15 = arith.addf %13, %14 : vector<128x1xf32>
    %16 = math.floor %15 : vector<128x1xf32>
    %cst_8 = arith.constant 8.000000e+00 : f32
    %17 = vector.broadcast %cst_8 : f32 to vector<128x1xf32>
    %18 = arith.mulf %16, %17 : vector<128x1xf32>
    %19 = arith.subf %11, %18 : vector<128x1xf32>
    %cst_9 = arith.constant 8.000000e+00 : f32
    %20 = vector.broadcast %cst_9 : f32 to vector<128x1xf32>
    %21 = arith.divf %16, %20 : vector<128x1xf32>
    %cst_10 = arith.constant 1.000000e-03 : f32
    %22 = vector.broadcast %cst_10 : f32 to vector<128x1xf32>
    %23 = arith.addf %21, %22 : vector<128x1xf32>
    %24 = math.floor %23 : vector<128x1xf32>
    %cst_11 = arith.constant 8.000000e+00 : f32
    %25 = vector.broadcast %cst_11 : f32 to vector<128x1xf32>
    %26 = arith.mulf %24, %25 : vector<128x1xf32>
    %27 = arith.subf %16, %26 : vector<128x1xf32>
    %cst_12 = arith.constant 5.000000e-01 : f32
    %28 = vector.broadcast %cst_12 : f32 to vector<128x1xf32>
    %29 = arith.cmpf olt, %19, %28 : vector<128x1xf32>
    %cst_13 = arith.constant 6.500000e+00 : f32
    %30 = vector.broadcast %cst_13 : f32 to vector<128x1xf32>
    %31 = arith.cmpf ogt, %19, %30 : vector<128x1xf32>
    %cst_14 = arith.constant 5.000000e-01 : f32
    %32 = vector.broadcast %cst_14 : f32 to vector<128x1xf32>
    %33 = arith.cmpf olt, %27, %32 : vector<128x1xf32>
    %cst_15 = arith.constant 6.500000e+00 : f32
    %34 = vector.broadcast %cst_15 : f32 to vector<128x1xf32>
    %35 = arith.cmpf ogt, %27, %34 : vector<128x1xf32>
    %c1_i32 = arith.constant 1 : i32
    %36 = tpu.dynamic_rotate %8 by %c1_i32 dim 0 : vector<128x128xf32>, i32 -> vector<128x128xf32>
    %cst_16 = arith.constant 0.000000e+00 : f32
    %37 = vector.shape_cast %29 : vector<128x1xi1> to vector<128x1xi1>
    %38 = vector.broadcast %37 : vector<128x1xi1> to vector<128x128xi1>
    %39 = vector.broadcast %cst_16 : f32 to vector<128x128xf32>
    %40 = arith.select %38, %39, %36 : vector<128x128xi1>, vector<128x128xf32>
    %c127_i32 = arith.constant 127 : i32
    %41 = tpu.dynamic_rotate %8 by %c127_i32 dim 0 : vector<128x128xf32>, i32 -> vector<128x128xf32>
    %cst_17 = arith.constant 0.000000e+00 : f32
    %42 = vector.shape_cast %31 : vector<128x1xi1> to vector<128x1xi1>
    %43 = vector.broadcast %42 : vector<128x1xi1> to vector<128x128xi1>
    %44 = vector.broadcast %cst_17 : f32 to vector<128x128xf32>
    %45 = arith.select %43, %44, %41 : vector<128x128xi1>, vector<128x128xf32>
    %46 = tpu.concatenate %40, %8, %45 in 1 : vector<128x128xf32>, vector<128x128xf32>, vector<128x128xf32> -> vector<128x384xf32>
    %c0_18 = arith.constant 0 : index
    %c0_19 = arith.constant 0 : index
    %47 = vector.load %arg4[%c0_18, %c0_19] : memref<384x384xf32, #tpu.memory_space<vmem>>, vector<384x384xf32>
    %cst_20 = arith.constant dense<0.000000e+00> : vector<128x384xf32>
    %48 = tpu.matmul %46, %47, %cst_20 {dimension_numbers = #tpu.dot_dimension_numbers<[1], [0], [0], [1], [0, 0, 1, 1], [], []>} : vector<128x384xf32>, vector<384x384xf32>, vector<128x384xf32> -> vector<128x384xf32>
    %49 = vector.extract_strided_slice %48 {offsets = [0, 128], sizes = [128, 128], strides = [1, 1]} : vector<128x384xf32> to vector<128x128xf32>
    %50 = vector.extract_strided_slice %48 {offsets = [0, 0], sizes = [128, 128], strides = [1, 1]} : vector<128x384xf32> to vector<128x128xf32>
    %c8_i32 = arith.constant 8 : i32
    %51 = tpu.dynamic_rotate %50 by %c8_i32 dim 0 : vector<128x128xf32>, i32 -> vector<128x128xf32>
    %cst_21 = arith.constant 0.000000e+00 : f32
    %52 = vector.shape_cast %33 : vector<128x1xi1> to vector<128x1xi1>
    %53 = vector.broadcast %52 : vector<128x1xi1> to vector<128x128xi1>
    %54 = vector.broadcast %cst_21 : f32 to vector<128x128xf32>
    %55 = arith.select %53, %54, %51 : vector<128x128xi1>, vector<128x128xf32>
    %56 = arith.addf %49, %55 : vector<128x128xf32>
    %57 = vector.extract_strided_slice %48 {offsets = [0, 256], sizes = [128, 128], strides = [1, 1]} : vector<128x384xf32> to vector<128x128xf32>
    %c120_i32 = arith.constant 120 : i32
    %58 = tpu.dynamic_rotate %57 by %c120_i32 dim 0 : vector<128x128xf32>, i32 -> vector<128x128xf32>
    %cst_22 = arith.constant 0.000000e+00 : f32
    %59 = vector.shape_cast %35 : vector<128x1xi1> to vector<128x1xi1>
    %60 = vector.broadcast %59 : vector<128x1xi1> to vector<128x128xi1>
    %61 = vector.broadcast %cst_22 : f32 to vector<128x128xf32>
    %62 = arith.select %60, %61, %58 : vector<128x128xi1>, vector<128x128xf32>
    %63 = arith.addf %56, %62 : vector<128x128xf32>
    %c0_23 = arith.constant 0 : index
    %c0_24 = arith.constant 0 : index
    %64 = vector.load %arg5[%c0_23, %c0_24] : memref<1x128xf32, #tpu.memory_space<vmem>>, vector<1x128xf32>
    %65 = vector.broadcast %64 : vector<1x128xf32> to vector<128x128xf32>
    %66 = arith.addf %63, %65 : vector<128x128xf32>
    %cst_25 = arith.constant 0.000000e+00 : f32
    %67 = vector.broadcast %cst_25 : f32 to vector<128x128xf32>
    %68 = arith.maximumf %66, %67 : vector<128x128xf32>
    %c0_26 = arith.constant 0 : index
    %c0_27 = arith.constant 0 : index
    %69 = vector.load %arg6[%c0_26, %c0_27] : memref<128x128xf32, #tpu.memory_space<vmem>>, vector<128x128xf32>
    %cst_28 = arith.constant dense<0.000000e+00> : vector<128x128xf32>
    %70 = tpu.matmul %68, %69, %cst_28 {dimension_numbers = #tpu.dot_dimension_numbers<[1], [0], [0], [1], [0, 0, 1, 1], [], []>} : vector<128x128xf32>, vector<128x128xf32>, vector<128x128xf32> -> vector<128x128xf32>
    %c0_29 = arith.constant 0 : index
    %c0_30 = arith.constant 0 : index
    %71 = vector.load %arg7[%c0_29, %c0_30] : memref<1x128xf32, #tpu.memory_space<vmem>>, vector<1x128xf32>
    %72 = vector.broadcast %71 : vector<1x128xf32> to vector<128x128xf32>
    %73 = arith.addf %70, %72 : vector<128x128xf32>
    %74 = arith.addf %73, %9 : vector<128x128xf32>
    %cst_31 = arith.constant 0.000000e+00 : f32
    %75 = vector.broadcast %cst_31 : f32 to vector<128x128xf32>
    %76 = arith.maximumf %74, %75 : vector<128x128xf32>
    %c0_32 = arith.constant 0 : index
    %c0_33 = arith.constant 0 : index
    %77 = vector.load %arg8[%c0_32, %c0_33] : memref<128x128xf32, #tpu.memory_space<vmem>>, vector<128x128xf32>
    tpu.vector_store %arg8[%c0_32, %c0_33], %76 {strides = array<i32>} : memref<128x128xf32, #tpu.memory_space<vmem>>, vector<128x128xf32>,
    return
  }
  func.func @transform_0(%arg0: i32) -> (i32, i32) {
    %c0_i32 = arith.constant 0 : i32
    %c0_i32_0 = arith.constant 0 : i32
    return %arg0, %c0_i32 : i32, i32
  }
  func.func @transform_1(%arg0: i32) -> (i32, i32) {
    %c0_i32 = arith.constant 0 : i32
    %c0_i32_0 = arith.constant 0 : i32
    %c0_i32_1 = arith.constant 0 : i32
    return %c0_i32, %c0_i32_0 : i32, i32
  }
  func.func @transform_2(%arg0: i32) -> (i32, i32) {
    %c0_i32 = arith.constant 0 : i32
    %c0_i32_0 = arith.constant 0 : i32
    %c0_i32_1 = arith.constant 0 : i32
    return %c0_i32, %c0_i32_0 : i32, i32
  }
  func.func @transform_3(%arg0: i32) -> (i32, i32) {
    %c0_i32 = arith.constant 0 : i32
    %c0_i32_0 = arith.constant 0 : i32
    %c0_i32_1 = arith.constant 0 : i32
    return %c0_i32, %c0_i32_0 : i32, i32
  }
  func.func @transform_4(%arg0: i32) -> (i32, i32) {
    %c0_i32 = arith.constant 0 : i32
    %c0_i32_0 = arith.constant 0 : i32
    %c0_i32_1 = arith.constant 0 : i32
    return %c0_i32, %c0_i32_0 : i32, i32
  }
  func.func @transform_5(%arg0: i32) -> (i32, i32) {
    %c0_i32 = arith.constant 0 : i32
    %c0_i32_0 = arith.constant 0 : i32
    %c0_i32_1 = arith.constant 0 : i32
    return %c0_i32, %c0_i32_0 : i32, i32
  }
  func.func @transform_6(%arg0: i32) -> (i32, i32) {
    %c0_i32 = arith.constant 0 : i32
    %c0_i32_0 = arith.constant 0 : i32
    %c0_i32_1 = arith.constant 0 : i32
    return %c0_i32, %c0_i32_0 : i32, i32
  }
  func.func @transform_7(%arg0: i32) -> (i32, i32) {
    %c0_i32 = arith.constant 0 : i32
    %c0_i32_0 = arith.constant 0 : i32
    return %arg0, %c0_i32 : i32, i32
  }
}

</mosaic_0001>

<llo_original>
// kernel: bottleneck_forward.1
$region0: #{bottleneck_forward.1}
  #allocation0 [shape = 'u32[]', space=smem, size = 0x4, offset = 0x4, fixed_abs, tag = 'smem constant byte address 0x4 - core index']
  #allocation1 [shape = 'u32[144,128]{1,0:T(1,128)}', space=vmem, size = 0x12000, scoped, tag = 'internal scratch']
  %s0 = inlined_call_operand.vmem [shape: f32[128,128], index: 0, kind: input, shape index: {}]
  %s1 = inlined_call_operand.vmem [shape: f32[128,256], index: 1, kind: input, shape index: {}]
  %s2 = inlined_call_operand.vmem [shape: f32[1,256], index: 2, kind: input, shape index: {}]
  %s3 = inlined_call_operand.vmem [shape: f32[384,384], index: 3, kind: input, shape index: {}]
  %s4 = inlined_call_operand.vmem [shape: f32[1,128], index: 4, kind: input, shape index: {}]
  %s5 = inlined_call_operand.vmem [shape: f32[128,128], index: 5, kind: input, shape index: {}]
  %s6 = inlined_call_operand.vmem [shape: f32[1,128], index: 6, kind: input, shape index: {}]
  %s7 = inlined_call_operand.hbm [shape: f32[128,128], index: 7, kind: output, shape index: {}]
  %s8 = sld [smem:[#allocation0]]
  $region38: #{bottleneck_forward.1} parent=0
    _
  %s10 = ssub.s32 1, %s8
  %s11 = scalar_select 0, %s10, %s8
  $region1: #{bottleneck_forward.1} parent=0
    #allocation2 [shape = 'u8[65536]{0}', space=vmem, size = 0x10000, scoped, tag = 'output window, operand 0, single buffered']
    #allocation3 [shape = 's32[1]{0}', space=sflag, size = 0x4, scoped, tag = 'scoped memory for bottleneck_forward.1']
    %12 = vsyncpa [#allocation3], 0
    // Predicated region
    $region2: #{bottleneck_forward.1} parent=1 // pred_check
      _
    $region3: #{bottleneck_forward.1} parent=1 // pred_check_branch
      %14 = sbr.rel (0) target = $region5
    $region4: #{bottleneck_forward.1} parent=1 // pred_region
      _
    $region5: #{bottleneck_forward.1} parent=1 // pred_fallthru
      _
    // Predicated region
    $region6: #{bottleneck_forward.1} parent=1 // pred_check
      _
    $region7: #{bottleneck_forward.1} parent=1 // pred_check_branch
      %16 = sbr.rel (0) target = $region9
    $region8: #{bottleneck_forward.1} parent=1 // pred_region
      _
    $region9: #{bottleneck_forward.1} parent=1 // pred_fallthru
      _
    // Predicated region
    $region10: #{bottleneck_forward.1} parent=1 // pred_check
      _
    $region11: #{bottleneck_forward.1} parent=1 // pred_check_branch
      %18 = sbr.rel (0) target = $region13
    $region12: #{bottleneck_forward.1} parent=1 // pred_region
      _
    $region13: #{bottleneck_forward.1} parent=1 // pred_fallthru
      _
    // Predicated region
    $region14: #{bottleneck_forward.1} parent=1 // pred_check
      _
    $region15: #{bottleneck_forward.1} parent=1 // pred_check_branch
      %20 = sbr.rel (0) target = $region17
    $region16: #{bottleneck_forward.1} parent=1 // pred_region
      _
    $region17: #{bottleneck_forward.1} parent=1 // pred_fallthru
      _
    // Predicated region
    $region18: #{bottleneck_forward.1} parent=1 // pred_check
      _
    $region19: #{bottleneck_forward.1} parent=1 // pred_check_branch
      %22 = sbr.rel (0) target = $region21
    $region20: #{bottleneck_forward.1} parent=1 // pred_region
      _
    $region21: #{bottleneck_forward.1} parent=1 // pred_fallthru
      _
    // Predicated region
    $region22: #{bottleneck_forward.1} parent=1 // pred_check
      _
    $region23: #{bottleneck_forward.1} parent=1 // pred_check_branch
      %24 = sbr.rel (0) target = $region25
    $region24: #{bottleneck_forward.1} parent=1 // pred_region
      _
    $region25: #{bottleneck_forward.1} parent=1 // pred_fallthru
      _
    // Predicated region
    $region26: #{bottleneck_forward.1} parent=1 // pred_check
      _
    $region27: #{bottleneck_forward.1} parent=1 // pred_check_branch
      %26 = sbr.rel (0) target = $region29
    $region28: #{bottleneck_forward.1} parent=1 // pred_region
      _
    $region29: #{bottleneck_forward.1} parent=1 // pred_fallthru
      _
    %v27 = vld [vmem:[%s0] sm:$0xff]
    %v28 = vld [vmem:[%s0 + $0x8] sm:$0xff]
    %v29 = vld [vmem:[%s0 + $0x10] sm:$0xff]
    %v30 = vld [vmem:[%s0 + $0x18] sm:$0xff]
    %v31 = vld [vmem:[%s0 + $0x20] sm:$0xff]
    %v32 = vld [vmem:[%s0 + $0x28] sm:$0xff]
    %v33 = vld [vmem:[%s0 + $0x30] sm:$0xff]
    %v34 = vld [vmem:[%s0 + $0x38] sm:$0xff]
    %v35 = vld [vmem:[%s0 + $0x40] sm:$0xff]
    %v36 = vld [vmem:[%s0 + $0x48] sm:$0xff]
    %v37 = vld [vmem:[%s0 + $0x50] sm:$0xff]
    %v38 = vld [vmem:[%s0 + $0x58] sm:$0xff]
    %v39 = vld [vmem:[%s0 + $0x60] sm:$0xff]
    %v40 = vld [vmem:[%s0 + $0x68] sm:$0xff]
    %v41 = vld [vmem:[%s0 + $0x70] sm:$0xff]
    %v42 = vld [vmem:[%s0 + $0x78] sm:$0xff]
    %v43 = vld [vmem:[%s1] sm:$0xff]
    %v44 = vld [vmem:[%s1 + $0x8] sm:$0xff]
    %v45 = vld [vmem:[%s1 + $0x10] sm:$0xff]
    %v46 = vld [vmem:[%s1 + $0x18] sm:$0xff]
    %v47 = vld [vmem:[%s1 + $0x20] sm:$0xff]
    %v48 = vld [vmem:[%s1 + $0x28] sm:$0xff]
    %v49 = vld [vmem:[%s1 + $0x30] sm:$0xff]
    %v50 = vld [vmem:[%s1 + $0x38] sm:$0xff]
    %v51 = vld [vmem:[%s1 + $0x40] sm:$0xff]
    %v52 = vld [vmem:[%s1 + $0x48] sm:$0xff]
    %v53 = vld [vmem:[%s1 + $0x50] sm:$0xff]
    %v54 = vld [vmem:[%s1 + $0x58] sm:$0xff]
    %v55 = vld [vmem:[%s1 + $0x60] sm:$0xff]
    %v56 = vld [vmem:[%s1 + $0x68] sm:$0xff]
    %v57 = vld [vmem:[%s1 + $0x70] sm:$0xff]
    %v58 = vld [vmem:[%s1 + $0x78] sm:$0xff]
    %v59 = vld [vmem:[%s1 + $0x80] sm:$0xff]
    %v60 = vld [vmem:[%s1 + $0x88] sm:$0xff]
    %v61 = vld [vmem:[%s1 + $0x90] sm:$0xff]
    %v62 = vld [vmem:[%s1 + $0x98] sm:$0xff]
    %v63 = vld [vmem:[%s1 + $0xa0] sm:$0xff]
    %v64 = vld [vmem:[%s1 + $0xa8] sm:$0xff]
    %v65 = vld [vmem:[%s1 + $0xb0] sm:$0xff]
    %v66 = vld [vmem:[%s1 + $0xb8] sm:$0xff]
    %v67 = vld [vmem:[%s1 + $0xc0] sm:$0xff]
    %v68 = vld [vmem:[%s1 + $0xc8] sm:$0xff]
    %v69 = vld [vmem:[%s1 + $0xd0] sm:$0xff]
    %v70 = vld [vmem:[%s1 + $0xd8] sm:$0xff]
    %v71 = vld [vmem:[%s1 + $0xe0] sm:$0xff]
    %v72 = vld [vmem:[%s1 + $0xe8] sm:$0xff]
    %v73 = vld [vmem:[%s1 + $0xf0] sm:$0xff]
    %v74 = vld [vmem:[%s1 + $0xf8] sm:$0xff]
    %v75 = vld [vmem:[%s2] sm:$0x3]
    %v77 = vlaneseq
    %v78 = vshrl.u32 %v77, 7
    %v79 = vsub.s32 0, %v78
    %v80 = vrot.slane %v75, %v79
    %v81 = vlaneseq
    %v82 = vshrl.u32 %v81, 7
    %v83 = vsub.s32 1, %v82
    %v84 = vrot.slane %v75, %v83
    %87 = vmatprep.subr.mxu0 %v74
    %88 = vmatpush1.msra.mxu0 %v73
    %89 = vmatprep.subr.mxu0 %v72
    %90 = vmatpush1.msra.mxu0 %v71
    %91 = vmatprep.subr.mxu0 %v70
    %92 = vmatpush1.msra.mxu0 %v69
    %93 = vmatprep.subr.mxu0 %v68
    %94 = vmatpush1.msra.mxu0 %v67
    %95 = vmatprep.subr.mxu0 %v66
    %96 = vmatpush1.msra.mxu0 %v65
    %97 = vmatprep.subr.mxu0 %v64
    %98 = vmatpush1.msra.mxu0 %v63
    %99 = vmatprep.subr.mxu0 %v62
    %100 = vmatpush1.msra.mxu0 %v61
    %101 = vmatprep.subr.mxu0 %v60
    %102 = vmatpush1.msra.mxu0 %v59
    %103 = vmatprep.subr.mxu0 %v58
    %104 = vmatpush1.msra.mxu0 %v57
    %105 = vmatprep.subr.mxu0 %v56
    %106 = vmatpush1.msra.mxu0 %v55
    %107 = vmatprep.subr.mxu0 %v54
    %108 = vmatpush1.msra.mxu0 %v53
    %109 = vmatprep.subr.mxu0 %v52
    %110 = vmatpush1.msra.mxu0 %v51
    %111 = vmatprep.subr.mxu0 %v50
    %112 = vmatpush1.msra.mxu0 %v49
    %113 = vmatprep.subr.mxu0 %v48
    %114 = vmatpush1.msra.mxu0 %v47
    %115 = vmatprep.subr.mxu0 %v46
    %116 = vmatpush1.msra.mxu0 %v45
    %117 = vmatprep.subr.mxu0 %v44
    %118 = vmatpush1.msra.mxu0 %v43
    %119 = vmatprep.subr.mxu0 0.0
    %120 = vmatpush2.msra.mxu0 0.0
    %121 = vmatprep.subr.mxu0 0.0
    %122 = vmatpush2.msra.mxu0 0.0
    %123 = vmatprep.subr.mxu0 0.0
    %124 = vmatpush2.msra.mxu0 0.0
    %125 = vmatprep.subr.mxu0 0.0
    %126 = vmatpush2.msra.mxu0 0.0
    %127 = vmatprep.subr.mxu0 0.0
    %128 = vmatpush2.msra.mxu0 0.0
    %129 = vmatprep.subr.mxu0 0.0
    %130 = vmatpush2.msra.mxu0 0.0
    %131 = vmatprep.subr.mxu0 0.0
    %132 = vmatpush2.msra.mxu0 0.0
    %133 = vmatprep.subr.mxu0 0.0
    %134 = vmatpush2.msra.mxu0 0.0
    %135 = vmatprep.subr.mxu0 0.0
    %136 = vmatpush2.msra.mxu0 0.0
    %137 = vmatprep.subr.mxu0 0.0
    %138 = vmatpush2.msra.mxu0 0.0
    %139 = vmatprep.subr.mxu0 0.0
    %140 = vmatpush2.msra.mxu0 0.0
    %141 = vmatprep.subr.mxu0 0.0
    %142 = vmatpush2.msra.mxu0 0.0
    %143 = vmatprep.subr.mxu0 0.0
    %144 = vmatpush2.msra.mxu0 0.0
    %145 = vmatprep.subr.mxu0 0.0
    %146 = vmatpush2.msra.mxu0 0.0
    %147 = vmatprep.subr.mxu0 0.0
    %148 = vmatpush2.msra.mxu0 0.0
    %149 = vmatprep.subr.mxu0 0.0
    %150 = vmatpush2.msra.mxu0 0.0
    %151 = vmatprep.mubr.f32.mxu0 0.0
    %152 = vmatmul.mubr.f32.gmra.mxu0 %v27
    %v153 = vpop.f32.mrf.mxu0
    %v154 = vadd.f32 %v80, %v153
    %v155 = vpop.f32.mrf.mxu0
    %v156 = vadd.f32 %v84, %v155
    %157 = vmatprep.mubr.f32.mxu0 0.0
    %158 = vmatmul.mubr.f32.gmra.mxu0 %v28
    %v159 = vpop.f32.mrf.mxu0
    %v160 = vadd.f32 %v80, %v159
    %v161 = vpop.f32.mrf.mxu0
    %v162 = vadd.f32 %v84, %v161
    %163 = vmatprep.mubr.f32.mxu0 0.0
    %164 = vmatmul.mubr.f32.gmra.mxu0 %v29
    %v165 = vpop.f32.mrf.mxu0
    %v166 = vadd.f32 %v80, %v165
    %v167 = vpop.f32.mrf.mxu0
    %v168 = vadd.f32 %v84, %v167
    %169 = vmatprep.mubr.f32.mxu0 0.0
    %170 = vmatmul.mubr.f32.gmra.mxu0 %v30
    %v171 = vpop.f32.mrf.mxu0
    %v172 = vadd.f32 %v80, %v171
    %v173 = vpop.f32.mrf.mxu0
    %v174 = vadd.f32 %v84, %v173
    %175 = vmatprep.mubr.f32.mxu0 0.0
    %176 = vmatmul.mubr.f32.gmra.mxu0 %v31
    %v177 = vpop.f32.mrf.mxu0
    %v178 = vadd.f32 %v80, %v177
    %v179 = vpop.f32.mrf.mxu0
    %v180 = vadd.f32 %v84, %v179
    %181 = vmatprep.mubr.f32.mxu0 0.0
    %182 = vmatmul.mubr.f32.gmra.mxu0 %v32
    %v183 = vpop.f32.mrf.mxu0
    %v184 = vadd.f32 %v80, %v183
    %v185 = vpop.f32.mrf.mxu0
    %v186 = vadd.f32 %v84, %v185
    %187 = vmatprep.mubr.f32.mxu0 0.0
    %188 = vmatmul.mubr.f32.gmra.mxu0 %v33
    %v189 = vpop.f32.mrf.mxu0
    %v190 = vadd.f32 %v80, %v189
    %v191 = vpop.f32.mrf.mxu0
    %v192 = vadd.f32 %v84, %v191
    %193 = vmatprep.mubr.f32.mxu0 0.0
    %194 = vmatmul.mubr.f32.gmra.mxu0 %v34
    %v195 = vpop.f32.mrf.mxu0
    %v196 = vadd.f32 %v80, %v195
    %v197 = vpop.f32.mrf.mxu0
    %v198 = vadd.f32 %v84, %v197
    %199 = vmatprep.mubr.f32.mxu0 0.0
    %200 = vmatmul.mubr.f32.gmra.mxu0 %v35
    %v201 = vpop.f32.mrf.mxu0
    %v202 = vadd.f32 %v80, %v201
    %v203 = vpop.f32.mrf.mxu0
    %v204 = vadd.f32 %v84, %v203
    %205 = vmatprep.mubr.f32.mxu0 0.0
    %206 = vmatmul.mubr.f32.gmra.mxu0 %v36
    %v207 = vpop.f32.mrf.mxu0
    %v208 = vadd.f32 %v80, %v207
    %v209 = vpop.f32.mrf.mxu0
    %v210 = vadd.f32 %v84, %v209
    %211 = vmatprep.mubr.f32.mxu0 0.0
    %212 = vmatmul.mubr.f32.gmra.mxu0 %v37
    %v213 = vpop.f32.mrf.mxu0
    %v214 = vadd.f32 %v80, %v213
    %v215 = vpop.f32.mrf.mxu0
    %v216 = vadd.f32 %v84, %v215
    %217 = vmatprep.mubr.f32.mxu0 0.0
    %218 = vmatmul.mubr.f32.gmra.mxu0 %v38
    %v219 = vpop.f32.mrf.mxu0
    %v220 = vadd.f32 %v80, %v219
    %v221 = vpop.f32.mrf.mxu0
    %v222 = vadd.f32 %v84, %v221
    %223 = vmatprep.mubr.f32.mxu0 0.0
    %224 = vmatmul.mubr.f32.gmra.mxu0 %v39
    %v225 = vpop.f32.mrf.mxu0
    %v226 = vadd.f32 %v80, %v225
    %v227 = vpop.f32.mrf.mxu0
    %v228 = vadd.f32 %v84, %v227
    %229 = vmatprep.mubr.f32.mxu0 0.0
    %230 = vmatmul.mubr.f32.gmra.mxu0 %v40
    %v231 = vpop.f32.mrf.mxu0
    %v232 = vadd.f32 %v80, %v231
    %v233 = vpop.f32.mrf.mxu0
    %v234 = vadd.f32 %v84, %v233
    %235 = vmatprep.mubr.f32.mxu0 0.0
    %236 = vmatmul.mubr.f32.gmra.mxu0 %v41
    %v237 = vpop.f32.mrf.mxu0
    %v238 = vadd.f32 %v80, %v237
    %v239 = vpop.f32.mrf.mxu0
    %v240 = vadd.f32 %v84, %v239
    %241 = vmatprep.mubr.f32.mxu0 0.0
    %242 = vmatmul.mubr.f32.gmra.mxu0 %v42
    %v243 = vpop.f32.mrf.mxu0
    %v244 = vadd.f32 %v80, %v243
    %v245 = vpop.f32.mrf.mxu0
    %v246 = vadd.f32 %v84, %v245
    %247 = vdwg.mxu0
    %v248 = vmax.f32 %v154, 0.0
    %v249 = vmax.f32 %v160, 0.0
    %v250 = vmax.f32 %v166, 0.0
    %v251 = vmax.f32 %v172, 0.0
    %v252 = vmax.f32 %v178, 0.0
    %v253 = vmax.f32 %v184, 0.0
    %v254 = vmax.f32 %v190, 0.0
    %v255 = vmax.f32 %v196, 0.0
    %v256 = vmax.f32 %v202, 0.0
    %v257 = vmax.f32 %v208, 0.0
    %v258 = vmax.f32 %v214, 0.0
    %v259 = vmax.f32 %v220, 0.0
    %v260 = vmax.f32 %v226, 0.0
    %v261 = vmax.f32 %v232, 0.0
    %v262 = vmax.f32 %v238, 0.0
    %v263 = vmax.f32 %v244, 0.0
    %v264 = vlaneseq
    %v265 = vshrl.u32 %v264, 7
    %v266 = vadd.s32 %v265, 8
    %v267 = vadd.s32 %v265, 16
    %v268 = vadd.s32 %v265, 24
    %v269 = vadd.s32 %v265, 32
    %v270 = vadd.s32 %v265, 40
    %v271 = vadd.s32 %v265, 48
    %v272 = vadd.s32 %v265, 56
    %v273 = vadd.s32 %v265, 64
    %v274 = vadd.s32 %v265, 72
    %v275 = vadd.s32 %v265, 80
    %v276 = vadd.s32 %v265, 88
    %v277 = vadd.s32 %v265, 96
    %v278 = vadd.s32 %v265, 104
    %v279 = vadd.s32 %v265, 112
    %v280 = vadd.s32 %v265, 120
    %v281 = vcvt.s32.f32 %v265
    %v282 = vcvt.s32.f32 %v266
    %v283 = vcvt.s32.f32 %v267
    %v284 = vcvt.s32.f32 %v268
    %v285 = vcvt.s32.f32 %v269
    %v286 = vcvt.s32.f32 %v270
    %v287 = vcvt.s32.f32 %v271
    %v288 = vcvt.s32.f32 %v272
    %v289 = vcvt.s32.f32 %v273
    %v290 = vcvt.s32.f32 %v274
    %v291 = vcvt.s32.f32 %v275
    %v292 = vcvt.s32.f32 %v276
    %v293 = vcvt.s32.f32 %v277
    %v294 = vcvt.s32.f32 %v278
    %v295 = vcvt.s32.f32 %v279
    %v296 = vcvt.s32.f32 %v280
    %v297 = vrcp.pop 8.0
    %v298 = vmul.f32 %v281, %v297
    %v299 = vmul.f32 %v282, %v297
    %v300 = vmul.f32 %v283, %v297
    %v301 = vmul.f32 %v284, %v297
    %v302 = vmul.f32 %v285, %v297
    %v303 = vmul.f32 %v286, %v297
    %v304 = vmul.f32 %v287, %v297
    %v305 = vmul.f32 %v288, %v297
    %v306 = vmul.f32 %v289, %v297
    %v307 = vmul.f32 %v290, %v297
    %v308 = vmul.f32 %v291, %v297
    %v309 = vmul.f32 %v292, %v297
    %v310 = vmul.f32 %v293, %v297
    %v311 = vmul.f32 %v294, %v297
    %v312 = vmul.f32 %v295, %v297
    %v313 = vmul.f32 %v296, %v297
    %v314 = vadd.f32 %v298, 0.001
    %v315 = vadd.f32 %v299, 0.001
    %v316 = vadd.f32 %v300, 0.001
    %v317 = vadd.f32 %v301, 0.001
    %v318 = vadd.f32 %v302, 0.001
    %v319 = vadd.f32 %v303, 0.001
    %v320 = vadd.f32 %v304, 0.001
    %v321 = vadd.f32 %v305, 0.001
    %v322 = vadd.f32 %v306, 0.001
    %v323 = vadd.f32 %v307, 0.001
    %v324 = vadd.f32 %v308, 0.001
    %v325 = vadd.f32 %v309, 0.001
    %v326 = vadd.f32 %v310, 0.001
    %v327 = vadd.f32 %v311, 0.001
    %v328 = vadd.f32 %v312, 0.001
    %v329 = vadd.f32 %v313, 0.001
    %v330 = vfloor.f32 %v314
    %v331 = vfloor.f32 %v315
    %v332 = vfloor.f32 %v316
    %v333 = vfloor.f32 %v317
    %v334 = vfloor.f32 %v318
    %v335 = vfloor.f32 %v319
    %v336 = vfloor.f32 %v320
    %v337 = vfloor.f32 %v321
    %v338 = vfloor.f32 %v322
    %v339 = vfloor.f32 %v323
    %v340 = vfloor.f32 %v324
    %v341 = vfloor.f32 %v325
    %v342 = vfloor.f32 %v326
    %v343 = vfloor.f32 %v327
    %v344 = vfloor.f32 %v328
    %v345 = vfloor.f32 %v329
    %v346 = vmul.f32 %v330, 8.0
    %v347 = vmul.f32 %v331, 8.0
    %v348 = vmul.f32 %v332, 8.0
    %v349 = vmul.f32 %v333, 8.0
    %v350 = vmul.f32 %v334, 8.0
    %v351 = vmul.f32 %v335, 8.0
    %v352 = vmul.f32 %v336, 8.0
    %v353 = vmul.f32 %v337, 8.0
    %v354 = vmul.f32 %v338, 8.0
    %v355 = vmul.f32 %v339, 8.0
    %v356 = vmul.f32 %v340, 8.0
    %v357 = vmul.f32 %v341, 8.0
    %v358 = vmul.f32 %v342, 8.0
    %v359 = vmul.f32 %v343, 8.0
    %v360 = vmul.f32 %v344, 8.0
    %v361 = vmul.f32 %v345, 8.0
    %v362 = vsub.f32 %v281, %v346
    %v363 = vsub.f32 %v282, %v347
    %v364 = vsub.f32 %v283, %v348
    %v365 = vsub.f32 %v284, %v349
    %v366 = vsub.f32 %v285, %v350
    %v367 = vsub.f32 %v286, %v351
    %v368 = vsub.f32 %v287, %v352
    %v369 = vsub.f32 %v288, %v353
    %v370 = vsub.f32 %v289, %v354
    %v371 = vsub.f32 %v290, %v355
    %v372 = vsub.f32 %v291, %v356
    %v373 = vsub.f32 %v292, %v357
    %v374 = vsub.f32 %v293, %v358
    %v375 = vsub.f32 %v294, %v359
    %v376 = vsub.f32 %v295, %v360
    %v377 = vsub.f32 %v296, %v361
    %v378 = vmul.f32 %v330, %v297
    %v379 = vmul.f32 %v331, %v297
    %v380 = vmul.f32 %v332, %v297
    %v381 = vmul.f32 %v333, %v297
    %v382 = vmul.f32 %v334, %v297
    %v383 = vmul.f32 %v335, %v297
    %v384 = vmul.f32 %v336, %v297
    %v385 = vmul.f32 %v337, %v297
    %v386 = vmul.f32 %v338, %v297
    %v387 = vmul.f32 %v339, %v297
    %v388 = vmul.f32 %v340, %v297
    %v389 = vmul.f32 %v341, %v297
    %v390 = vmul.f32 %v342, %v297
    %v391 = vmul.f32 %v343, %v297
    %v392 = vmul.f32 %v344, %v297
    %v393 = vmul.f32 %v345, %v297
    %v394 = vadd.f32 %v378, 0.001
    %v395 = vadd.f32 %v379, 0.001
    %v396 = vadd.f32 %v380, 0.001
    %v397 = vadd.f32 %v381, 0.001
    %v398 = vadd.f32 %v382, 0.001
    %v399 = vadd.f32 %v383, 0.001
    %v400 = vadd.f32 %v384, 0.001
    %v401 = vadd.f32 %v385, 0.001
    %v402 = vadd.f32 %v386, 0.001
    %v403 = vadd.f32 %v387, 0.001
    %v404 = vadd.f32 %v388, 0.001
    %v405 = vadd.f32 %v389, 0.001
    %v406 = vadd.f32 %v390, 0.001
    %v407 = vadd.f32 %v391, 0.001
    %v408 = vadd.f32 %v392, 0.001
    %v409 = vadd.f32 %v393, 0.001
    %v410 = vfloor.f32 %v394
    %v411 = vfloor.f32 %v395
    %v412 = vfloor.f32 %v396
    %v413 = vfloor.f32 %v397
    %v414 = vfloor.f32 %v398
    %v415 = vfloor.f32 %v399
    %v416 = vfloor.f32 %v400
    %v417 = vfloor.f32 %v401
    %v418 = vfloor.f32 %v402
    %v419 = vfloor.f32 %v403
    %v420 = vfloor.f32 %v404
    %v421 = vfloor.f32 %v405
    %v422 = vfloor.f32 %v406
    %v423 = vfloor.f32 %v407
    %v424 = vfloor.f32 %v408
    %v425 = vfloor.f32 %v409
    %v426 = vmul.f32 %v410, 8.0
    %v427 = vmul.f32 %v411, 8.0
    %v428 = vmul.f32 %v412, 8.0
    %v429 = vmul.f32 %v413, 8.0
    %v430 = vmul.f32 %v414, 8.0
    %v431 = vmul.f32 %v415, 8.0
    %v432 = vmul.f32 %v416, 8.0
    %v433 = vmul.f32 %v417, 8.0
    %v434 = vmul.f32 %v418, 8.0
    %v435 = vmul.f32 %v419, 8.0
    %v436 = vmul.f32 %v420, 8.0
    %v437 = vmul.f32 %v421, 8.0
    %v438 = vmul.f32 %v422, 8.0
    %v439 = vmul.f32 %v423, 8.0
    %v440 = vmul.f32 %v424, 8.0
    %v441 = vmul.f32 %v425, 8.0
    %v442 = vsub.f32 %v330, %v426
    %v443 = vsub.f32 %v331, %v427
    %v444 = vsub.f32 %v332, %v428
    %v445 = vsub.f32 %v333, %v429
    %v446 = vsub.f32 %v334, %v430
    %v447 = vsub.f32 %v335, %v431
    %v448 = vsub.f32 %v336, %v432
    %v449 = vsub.f32 %v337, %v433
    %v450 = vsub.f32 %v338, %v434
    %v451 = vsub.f32 %v339, %v435
    %v452 = vsub.f32 %v340, %v436
    %v453 = vsub.f32 %v341, %v437
    %v454 = vsub.f32 %v342, %v438
    %v455 = vsub.f32 %v343, %v439
    %v456 = vsub.f32 %v344, %v440
    %v457 = vsub.f32 %v345, %v441
    %vm458 = vcmp.lt.f32.partialorder %v362, 0.5
    %vm459 = vcmp.lt.f32.partialorder %v363, 0.5
    %vm460 = vcmp.lt.f32.partialorder %v364, 0.5
    %vm461 = vcmp.lt.f32.partialorder %v365, 0.5
    %vm462 = vcmp.lt.f32.partialorder %v366, 0.5
    %vm463 = vcmp.lt.f32.partialorder %v367, 0.5
    %vm464 = vcmp.lt.f32.partialorder %v368, 0.5
    %vm465 = vcmp.lt.f32.partialorder %v369, 0.5
    %vm466 = vcmp.lt.f32.partialorder %v370, 0.5
    %vm467 = vcmp.lt.f32.partialorder %v371, 0.5
    %vm468 = vcmp.lt.f32.partialorder %v372, 0.5
    %vm469 = vcmp.lt.f32.partialorder %v373, 0.5
    %vm470 = vcmp.lt.f32.partialorder %v374, 0.5
    %vm471 = vcmp.lt.f32.partialorder %v375, 0.5
    %vm472 = vcmp.lt.f32.partialorder %v376, 0.5
    %vm473 = vcmp.lt.f32.partialorder %v377, 0.5
    %vm474 = vcmp.gt.f32.partialorder %v362, 6.5
    %vm475 = vcmp.gt.f32.partialorder %v363, 6.5
    %vm476 = vcmp.gt.f32.partialorder %v364, 6.5
    %vm477 = vcmp.gt.f32.partialorder %v365, 6.5
    %vm478 = vcmp.gt.f32.partialorder %v366, 6.5
    %vm479 = vcmp.gt.f32.partialorder %v367, 6.5
    %vm480 = vcmp.gt.f32.partialorder %v368, 6.5
    %vm481 = vcmp.gt.f32.partialorder %v369, 6.5
    %vm482 = vcmp.gt.f32.partialorder %v370, 6.5
    %vm483 = vcmp.gt.f32.partialorder %v371, 6.5
    %vm484 = vcmp.gt.f32.partialorder %v372, 6.5
    %vm485 = vcmp.gt.f32.partialorder %v373, 6.5
    %vm486 = vcmp.gt.f32.partialorder %v374, 6.5
    %vm487 = vcmp.gt.f32.partialorder %v375, 6.5
    %vm488 = vcmp.gt.f32.partialorder %v376, 6.5
    %vm489 = vcmp.gt.f32.partialorder %v377, 6.5
    %vm490 = vcmp.lt.f32.partialorder %v442, 0.5
    %vm491 = vcmp.lt.f32.partialorder %v443, 0.5
    %vm492 = vcmp.lt.f32.partialorder %v444, 0.5
    %vm493 = vcmp.lt.f32.partialorder %v445, 0.5
    %vm494 = vcmp.lt.f32.partialorder %v446, 0.5
    %vm495 = vcmp.lt.f32.partialorder %v447, 0.5
    %vm496 = vcmp.lt.f32.partialorder %v448, 0.5
    %vm497 = vcmp.lt.f32.partialorder %v449, 0.5
    %vm498 = vcmp.lt.f32.partialorder %v450, 0.5
    %vm499 = vcmp.lt.f32.partialorder %v451, 0.5
    %vm500 = vcmp.lt.f32.partialorder %v452, 0.5
    %vm501 = vcmp.lt.f32.partialorder %v453, 0.5
    %vm502 = vcmp.lt.f32.partialorder %v454, 0.5
    %vm503 = vcmp.lt.f32.partialorder %v455, 0.5
    %vm504 = vcmp.lt.f32.partialorder %v456, 0.5
    %vm505 = vcmp.lt.f32.partialorder %v457, 0.5
    %vm506 = vcmp.gt.f32.partialorder %v442, 6.5
    %vm507 = vcmp.gt.f32.partialorder %v443, 6.5
    %vm508 = vcmp.gt.f32.partialorder %v444, 6.5
    %vm509 = vcmp.gt.f32.partialorder %v445, 6.5
    %vm510 = vcmp.gt.f32.partialorder %v446, 6.5
    %vm511 = vcmp.gt.f32.partialorder %v447, 6.5
    %vm512 = vcmp.gt.f32.partialorder %v448, 6.5
    %vm513 = vcmp.gt.f32.partialorder %v449, 6.5
    %vm514 = vcmp.gt.f32.partialorder %v450, 6.5
    %vm515 = vcmp.gt.f32.partialorder %v451, 6.5
    %vm516 = vcmp.gt.f32.partialorder %v452, 6.5
    %vm517 = vcmp.gt.f32.partialorder %v453, 6.5
    %vm518 = vcmp.gt.f32.partialorder %v454, 6.5
    %vm519 = vcmp.gt.f32.partialorder %v455, 6.5
    %vm520 = vcmp.gt.f32.partialorder %v456, 6.5
    %vm521 = vcmp.gt.f32.partialorder %v457, 6.5
    %v522 = vrot.slane %v248, 7
    %v523 = vrot.slane %v249, 7
    %v524 = vrot.slane %v250, 7
    %v525 = vrot.slane %v251, 7
    %v526 = vrot.slane %v252, 7
    %v527 = vrot.slane %v253, 7
    %v528 = vrot.slane %v254, 7
    %v529 = vrot.slane %v255, 7
    %v530 = vrot.slane %v256, 7
    %v531 = vrot.slane %v257, 7
    %v532 = vrot.slane %v258, 7
    %v533 = vrot.slane %v259, 7
    %v534 = vrot.slane %v260, 7
    %v535 = vrot.slane %v261, 7
    %v536 = vrot.slane %v262, 7
    %v537 = vrot.slane %v263, 7
    %vm538 = vcmp.lt.s32.totalorder %v265, 1
    %v539 = vsel %vm538, %v536, %v537
    %v540 = vsel %vm538, %v535, %v536
    %v541 = vsel %vm538, %v534, %v535
    %v542 = vsel %vm538, %v533, %v534
    %v543 = vsel %vm538, %v532, %v533
    %v544 = vsel %vm538, %v531, %v532
    %v545 = vsel %vm538, %v530, %v531
    %v546 = vsel %vm538, %v529, %v530
    %v547 = vsel %vm538, %v528, %v529
    %v548 = vsel %vm538, %v527, %v528
    %v549 = vsel %vm538, %v526, %v527
    %v550 = vsel %vm538, %v525, %v526
    %v551 = vsel %vm538, %v524, %v525
    %v552 = vsel %vm538, %v523, %v524
    %v553 = vsel %vm538, %v522, %v523
    %v554 = vsel %vm538, %v537, %v522
    %v555 = vsel %vm458, 1, 0
    %v556 = vsel %vm459, 1, 0
    %v557 = vsel %vm460, 1, 0
    %v558 = vsel %vm461, 1, 0
    %v559 = vsel %vm462, 1, 0
    %v560 = vsel %vm463, 1, 0
    %v561 = vsel %vm464, 1, 0
    %v562 = vsel %vm465, 1, 0
    %v563 = vsel %vm466, 1, 0
    %v564 = vsel %vm467, 1, 0
    %v565 = vsel %vm468, 1, 0
    %v566 = vsel %vm469, 1, 0
    %v567 = vsel %vm470, 1, 0
    %v568 = vsel %vm471, 1, 0
    %v569 = vsel %vm472, 1, 0
    %v570 = vsel %vm473, 1, 0
    %vm571 = vcmp.eq.s32.totalorder %v555, 1
    %vm572 = vcmp.eq.s32.totalorder %v556, 1
    %vm573 = vcmp.eq.s32.totalorder %v557, 1
    %vm574 = vcmp.eq.s32.totalorder %v558, 1
    %vm575 = vcmp.eq.s32.totalorder %v559, 1
    %vm576 = vcmp.eq.s32.totalorder %v560, 1
    %vm577 = vcmp.eq.s32.totalorder %v561, 1
    %vm578 = vcmp.eq.s32.totalorder %v562, 1
    %vm579 = vcmp.eq.s32.totalorder %v563, 1
    %vm580 = vcmp.eq.s32.totalorder %v564, 1
    %vm581 = vcmp.eq.s32.totalorder %v565, 1
    %vm582 = vcmp.eq.s32.totalorder %v566, 1
    %vm583 = vcmp.eq.s32.totalorder %v567, 1
    %vm584 = vcmp.eq.s32.totalorder %v568, 1
    %vm585 = vcmp.eq.s32.totalorder %v569, 1
    %vm586 = vcmp.eq.s32.totalorder %v570, 1
    %v587 = vsel %vm571, 0.0, %v554
    %v588 = vsel %vm572, 0.0, %v553
    %v589 = vsel %vm573, 0.0, %v552
    %v590 = vsel %vm574, 0.0, %v551
    %v591 = vsel %vm575, 0.0, %v550
    %v592 = vsel %vm576, 0.0, %v549
    %v593 = vsel %vm577, 0.0, %v548
    %v594 = vsel %vm578, 0.0, %v547
    %v595 = vsel %vm579, 0.0, %v546
    %v596 = vsel %vm580, 0.0, %v545
    %v597 = vsel %vm581, 0.0, %v544
    %v598 = vsel %vm582, 0.0, %v543
    %v599 = vsel %vm583, 0.0, %v542
    %v600 = vsel %vm584, 0.0, %v541
    %v601 = vsel %vm585, 0.0, %v540
    %v602 = vsel %vm586, 0.0, %v539
    %v603 = vrot.slane %v248, 1
    %v604 = vrot.slane %v249, 1
    %v605 = vrot.slane %v250, 1
    %v606 = vrot.slane %v251, 1
    %v607 = vrot.slane %v252, 1
    %v608 = vrot.slane %v253, 1
    %v609 = vrot.slane %v254, 1
    %v610 = vrot.slane %v255, 1
    %v611 = vrot.slane %v256, 1
    %v612 = vrot.slane %v257, 1
    %v613 = vrot.slane %v258, 1
    %v614 = vrot.slane %v259, 1
    %v615 = vrot.slane %v260, 1
    %v616 = vrot.slane %v261, 1
    %v617 = vrot.slane %v262, 1
    %v618 = vrot.slane %v263, 1
    %vm619 = vcmp.lt.s32.totalorder %v265, 7
    %v620 = vsel %vm619, %v617, %v618
    %v621 = vsel %vm619, %v616, %v617
    %v622 = vsel %vm619, %v615, %v616
    %v623 = vsel %vm619, %v614, %v615
    %v624 = vsel %vm619, %v613, %v614
    %v625 = vsel %vm619, %v612, %v613
    %v626 = vsel %vm619, %v611, %v612
    %v627 = vsel %vm619, %v610, %v611
    %v628 = vsel %vm619, %v609, %v610
    %v629 = vsel %vm619, %v608, %v609
    %v630 = vsel %vm619, %v607, %v608
    %v631 = vsel %vm619, %v606, %v607
    %v632 = vsel %vm619, %v605, %v606
    %v633 = vsel %vm619, %v604, %v605
    %v634 = vsel %vm619, %v603, %v604
    %v635 = vsel %vm619, %v618, %v603
    %v636 = vsel %vm474, 1, 0
    %v637 = vsel %vm475, 1, 0
    %v638 = vsel %vm476, 1, 0
    %v639 = vsel %vm477, 1, 0
    %v640 = vsel %vm478, 1, 0
    %v641 = vsel %vm479, 1, 0
    %v642 = vsel %vm480, 1, 0
    %v643 = vsel %vm481, 1, 0
    %v644 = vsel %vm482, 1, 0
    %v645 = vsel %vm483, 1, 0
    %v646 = vsel %vm484, 1, 0
    %v647 = vsel %vm485, 1, 0
    %v648 = vsel %vm486, 1, 0
    %v649 = vsel %vm487, 1, 0
    %v650 = vsel %vm488, 1, 0
    %v651 = vsel %vm489, 1, 0
    %vm652 = vcmp.eq.s32.totalorder %v636, 1
    %vm653 = vcmp.eq.s32.totalorder %v637, 1
    %vm654 = vcmp.eq.s32.totalorder %v638, 1
    %vm655 = vcmp.eq.s32.totalorder %v639, 1
    %vm656 = vcmp.eq.s32.totalorder %v640, 1
    %vm657 = vcmp.eq.s32.totalorder %v641, 1
    %vm658 = vcmp.eq.s32.totalorder %v642, 1
    %vm659 = vcmp.eq.s32.totalorder %v643, 1
    %vm660 = vcmp.eq.s32.totalorder %v644, 1
    %vm661 = vcmp.eq.s32.totalorder %v645, 1
    %vm662 = vcmp.eq.s32.totalorder %v646, 1
    %vm663 = vcmp.eq.s32.totalorder %v647, 1
    %vm664 = vcmp.eq.s32.totalorder %v648, 1
    %vm665 = vcmp.eq.s32.totalorder %v649, 1
    %vm666 = vcmp.eq.s32.totalorder %v650, 1
    %vm667 = vcmp.eq.s32.totalorder %v651, 1
    %v668 = vsel %vm652, 0.0, %v634
    %v669 = vsel %vm653, 0.0, %v633
    %v670 = vsel %vm654, 0.0, %v632
    %v671 = vsel %vm655, 0.0, %v631
    %v672 = vsel %vm656, 0.0, %v630
    %v673 = vsel %vm657, 0.0, %v629
    %v674 = vsel %vm658, 0.0, %v628
    %v675 = vsel %vm659, 0.0, %v627
    %v676 = vsel %vm660, 0.0, %v626
    %v677 = vsel %vm661, 0.0, %v625
    %v678 = vsel %vm662, 0.0, %v624
    %v679 = vsel %vm663, 0.0, %v623
    %v680 = vsel %vm664, 0.0, %v622
    %v681 = vsel %vm665, 0.0, %v621
    %v682 = vsel %vm666, 0.0, %v620
    %v683 = vsel %vm667, 0.0, %v635
    %v684 = vld [vmem:[%s3] sm:$0xff]
    %v685 = vld [vmem:[%s3 + $0x8] sm:$0xff]
    %v686 = vld [vmem:[%s3 + $0x10] sm:$0xff]
    %v687 = vld [vmem:[%s3 + $0x18] sm:$0xff]
    %v688 = vld [vmem:[%s3 + $0x20] sm:$0xff]
    %v689 = vld [vmem:[%s3 + $0x28] sm:$0xff]
    %v690 = vld [vmem:[%s3 + $0x30] sm:$0xff]
    %v691 = vld [vmem:[%s3 + $0x38] sm:$0xff]
    %v692 = vld [vmem:[%s3 + $0x40] sm:$0xff]
    %v693 = vld [vmem:[%s3 + $0x48] sm:$0xff]
    %v694 = vld [vmem:[%s3 + $0x50] sm:$0xff]
    %v695 = vld [vmem:[%s3 + $0x58] sm:$0xff]
    %v696 = vld [vmem:[%s3 + $0x60] sm:$0xff]
    %v697 = vld [vmem:[%s3 + $0x68] sm:$0xff]
    %v698 = vld [vmem:[%s3 + $0x70] sm:$0xff]
    %v699 = vld [vmem:[%s3 + $0x78] sm:$0xff]
    %v700 = vld [vmem:[%s3 + $0x80] sm:$0xff]
    %v701 = vld [vmem:[%s3 + $0x88] sm:$0xff]
    %v702 = vld [vmem:[%s3 + $0x90] sm:$0xff]
    %v703 = vld [vmem:[%s3 + $0x98] sm:$0xff]
    %v704 = vld [vmem:[%s3 + $0xa0] sm:$0xff]
    %v705 = vld [vmem:[%s3 + $0xa8] sm:$0xff]
    %v706 = vld [vmem:[%s3 + $0xb0] sm:$0xff]
    %v707 = vld [vmem:[%s3 + $0xb8] sm:$0xff]
    %v708 = vld [vmem:[%s3 + $0xc0] sm:$0xff]
    %v709 = vld [vmem:[%s3 + $0xc8] sm:$0xff]
    %v710 = vld [vmem:[%s3 + $0xd0] sm:$0xff]
    %v711 = vld [vmem:[%s3 + $0xd8] sm:$0xff]
    %v712 = vld [vmem:[%s3 + $0xe0] sm:$0xff]
    %v713 = vld [vmem:[%s3 + $0xe8] sm:$0xff]
    %v714 = vld [vmem:[%s3 + $0xf0] sm:$0xff]
    %v715 = vld [vmem:[%s3 + $0xf8] sm:$0xff]
    %v716 = vld [vmem:[%s3 + $0x100] sm:$0xff]
    %v717 = vld [vmem:[%s3 + $0x108] sm:$0xff]
    %v718 = vld [vmem:[%s3 + $0x110] sm:$0xff]
    %v719 = vld [vmem:[%s3 + $0x118] sm:$0xff]
    %v720 = vld [vmem:[%s3 + $0x120] sm:$0xff]
    %v721 = vld [vmem:[%s3 + $0x128] sm:$0xff]
    %v722 = vld [vmem:[%s3 + $0x130] sm:$0xff]
    %v723 = vld [vmem:[%s3 + $0x138] sm:$0xff]
    %v724 = vld [vmem:[%s3 + $0x140] sm:$0xff]
    %v725 = vld [vmem:[%s3 + $0x148] sm:$0xff]
    %v726 = vld [vmem:[%s3 + $0x150] sm:$0xff]
    %v727 = vld [vmem:[%s3 + $0x158] sm:$0xff]
    %v728 = vld [vmem:[%s3 + $0x160] sm:$0xff]
    %v729 = vld [vmem:[%s3 + $0x168] sm:$0xff]
    %v730 = vld [vmem:[%s3 + $0x170] sm:$0xff]
    %v731 = vld [vmem:[%s3 + $0x178] sm:$0xff]
    %v732 = vld [vmem:[%s3 + $0x180] sm:$0xff]
    %v733 = vld [vmem:[%s3 + $0x188] sm:$0xff]
    %v734 = vld [vmem:[%s3 + $0x190] sm:$0xff]
    %v735 = vld [vmem:[%s3 + $0x198] sm:$0xff]
    %v736 = vld [vmem:[%s3 + $0x1a0] sm:$0xff]
    %v737 = vld [vmem:[%s3 + $0x1a8] sm:$0xff]
    %v738 = vld [vmem:[%s3 + $0x1b0] sm:$0xff]
    %v739 = vld [vmem:[%s3 + $0x1b8] sm:$0xff]
    %v740 = vld [vmem:[%s3 + $0x1c0] sm:$0xff]
    %v741 = vld [vmem:[%s3 + $0x1c8] sm:$0xff]
    %v742 = vld [vmem:[%s3 + $0x1d0] sm:$0xff]
    %v743 = vld [vmem:[%s3 + $0x1d8] sm:$0xff]
    %v744 = vld [vmem:[%s3 + $0x1e0] sm:$0xff]
    %v745 = vld [vmem:[%s3 + $0x1e8] sm:$0xff]
    %v746 = vld [vmem:[%s3 + $0x1f0] sm:$0xff]
    %v747 = vld [vmem:[%s3 + $0x1f8] sm:$0xff]
    %v748 = vld [vmem:[%s3 + $0x200] sm:$0xff]
    %v749 = vld [vmem:[%s3 + $0x208] sm:$0xff]
    %v750 = vld [vmem:[%s3 + $0x210] sm:$0xff]
    %v751 = vld [vmem:[%s3 + $0x218] sm:$0xff]
    %v752 = vld [vmem:[%s3 + $0x220] sm:$0xff]
    %v753 = vld [vmem:[%s3 + $0x228] sm:$0xff]
    %v754 = vld [vmem:[%s3 + $0x230] sm:$0xff]
    %v755 = vld [vmem:[%s3 + $0x238] sm:$0xff]
    %v756 = vld [vmem:[%s3 + $0x240] sm:$0xff]
    %v757 = vld [vmem:[%s3 + $0x248] sm:$0xff]
    %v758 = vld [vmem:[%s3 + $0x250] sm:$0xff]
    %v759 = vld [vmem:[%s3 + $0x258] sm:$0xff]
    %v760 = vld [vmem:[%s3 + $0x260] sm:$0xff]
    %v761 = vld [vmem:[%s3 + $0x268] sm:$0xff]
    %v762 = vld [vmem:[%s3 + $0x270] sm:$0xff]
    %v763 = vld [vmem:[%s3 + $0x278] sm:$0xff]
    %v764 = vld [vmem:[%s3 + $0x280] sm:$0xff]
    %v765 = vld [vmem:[%s3 + $0x288] sm:$0xff]
    %v766 = vld [vmem:[%s3 + $0x290] sm:$0xff]
    %v767 = vld [vmem:[%s3 + $0x298] sm:$0xff]
    %v768 = vld [vmem:[%s3 + $0x2a0] sm:$0xff]
    %v769 = vld [vmem:[%s3 + $0x2a8] sm:$0xff]
    %v770 = vld [vmem:[%s3 + $0x2b0] sm:$0xff]
    %v771 = vld [vmem:[%s3 + $0x2b8] sm:$0xff]
    %v772 = vld [vmem:[%s3 + $0x2c0] sm:$0xff]
    %v773 = vld [vmem:[%s3 + $0x2c8] sm:$0xff]
    %v774 = vld [vmem:[%s3 + $0x2d0] sm:$0xff]
    %v775 = vld [vmem:[%s3 + $0x2d8] sm:$0xff]
    %v776 = vld [vmem:[%s3 + $0x2e0] sm:$0xff]
    %v777 = vld [vmem:[%s3 + $0x2e8] sm:$0xff]
    %v778 = vld [vmem:[%s3 + $0x2f0] sm:$0xff]
    %v779 = vld [vmem:[%s3 + $0x2f8] sm:$0xff]
    %v780 = vld [vmem:[%s3 + $0x300] sm:$0xff]
    %v781 = vld [vmem:[%s3 + $0x308] sm:$0xff]
    %v782 = vld [vmem:[%s3 + $0x310] sm:$0xff]
    %v783 = vld [vmem:[%s3 + $0x318] sm:$0xff]
    %v784 = vld [vmem:[%s3 + $0x320] sm:$0xff]
    %v785 = vld [vmem:[%s3 + $0x328] sm:$0xff]
    %v786 = vld [vmem:[%s3 + $0x330] sm:$0xff]
    %v787 = vld [vmem:[%s3 + $0x338] sm:$0xff]
    %v788 = vld [vmem:[%s3 + $0x340] sm:$0xff]
    %v789 = vld [vmem:[%s3 + $0x348] sm:$0xff]
    %v790 = vld [vmem:[%s3 + $0x350] sm:$0xff]
    %v791 = vld [vmem:[%s3 + $0x358] sm:$0xff]
    %v792 = vld [vmem:[%s3 + $0x360] sm:$0xff]
    %v793 = vld [vmem:[%s3 + $0x368] sm:$0xff]
    %v794 = vld [vmem:[%s3 + $0x370] sm:$0xff]
    %v795 = vld [vmem:[%s3 + $0x378] sm:$0xff]
    %v796 = vld [vmem:[%s3 + $0x380] sm:$0xff]
    %v797 = vld [vmem:[%s3 + $0x388] sm:$0xff]
    %v798 = vld [vmem:[%s3 + $0x390] sm:$0xff]
    %v799 = vld [vmem:[%s3 + $0x398] sm:$0xff]
    %v800 = vld [vmem:[%s3 + $0x3a0] sm:$0xff]
    %v801 = vld [vmem:[%s3 + $0x3a8] sm:$0xff]
    %v802 = vld [vmem:[%s3 + $0x3b0] sm:$0xff]
    %v803 = vld [vmem:[%s3 + $0x3b8] sm:$0xff]
    %v804 = vld [vmem:[%s3 + $0x3c0] sm:$0xff]
    %v805 = vld [vmem:[%s3 + $0x3c8] sm:$0xff]
    %v806 = vld [vmem:[%s3 + $0x3d0] sm:$0xff]
    %v807 = vld [vmem:[%s3 + $0x3d8] sm:$0xff]
    %v808 = vld [vmem:[%s3 + $0x3e0] sm:$0xff]
    %v809 = vld [vmem:[%s3 + $0x3e8] sm:$0xff]
    %v810 = vld [vmem:[%s3 + $0x3f0] sm:$0xff]
    %v811 = vld [vmem:[%s3 + $0x3f8] sm:$0xff]
    %v812 = vld [vmem:[%s3 + $0x400] sm:$0xff]
    %v813 = vld [vmem:[%s3 + $0x408] sm:$0xff]
    %v814 = vld [vmem:[%s3 + $0x410] sm:$0xff]
    %v815 = vld [vmem:[%s3 + $0x418] sm:$0xff]
    %v816 = vld [vmem:[%s3 + $0x420] sm:$0xff]
    %v817 = vld [vmem:[%s3 + $0x428] sm:$0xff]
    %v818 = vld [vmem:[%s3 + $0x430] sm:$0xff]
    %v819 = vld [vmem:[%s3 + $0x438] sm:$0xff]
    %v820 = vld [vmem:[%s3 + $0x440] sm:$0xff]
    %v821 = vld [vmem:[%s3 + $0x448] sm:$0xff]
    %v822 = vld [vmem:[%s3 + $0x450] sm:$0xff]
    %v823 = vld [vmem:[%s3 + $0x458] sm:$0xff]
    %v824 = vld [vmem:[%s3 + $0x460] sm:$0xff]
    %v825 = vld [vmem:[%s3 + $0x468] sm:$0xff]
    %v826 = vld [vmem:[%s3 + $0x470] sm:$0xff]
    %v827 = vld [vmem:[%s3 + $0x478] sm:$0xff]
    %828 = vmatprep.subr.mxu0 %v730
    %829 = vmatpush1.msra.mxu0 %v729
    %830 = vmatprep.subr.mxu0 %v727
    %831 = vmatpush1.msra.mxu0 %v726
    %832 = vmatprep.subr.mxu0 %v724
    %833 = vmatpush1.msra.mxu0 %v723
    %834 = vmatprep.subr.mxu0 %v721
    %835 = vmatpush1.msra.mxu0 %v720
    %836 = vmatprep.subr.mxu0 %v718
    %837 = vmatpush1.msra.mxu0 %v717
    %838 = vmatprep.subr.mxu0 %v715
    %839 = vmatpush1.msra.mxu0 %v714
    %840 = vmatprep.subr.mxu0 %v712
    %841 = vmatpush1.msra.mxu0 %v711
    %842 = vmatprep.subr.mxu0 %v709
    %843 = vmatpush1.msra.mxu0 %v708
    %844 = vmatprep.subr.mxu0 %v706
    %845 = vmatpush1.msra.mxu0 %v705
    %846 = vmatprep.subr.mxu0 %v703
    %847 = vmatpush1.msra.mxu0 %v702
    %848 = vmatprep.subr.mxu0 %v700
    %849 = vmatpush1.msra.mxu0 %v699
    %850 = vmatprep.subr.mxu0 %v697
    %851 = vmatpush1.msra.mxu0 %v696
    %852 = vmatprep.subr.mxu0 %v694
    %853 = vmatpush1.msra.mxu0 %v693
    %854 = vmatprep.subr.mxu0 %v691
    %855 = vmatpush1.msra.mxu0 %v690
    %856 = vmatprep.subr.mxu0 %v688
    %857 = vmatpush1.msra.mxu0 %v687
    %858 = vmatprep.subr.mxu0 %v685
    %859 = vmatpush1.msra.mxu0 %v684
    %860 = vmatprep.subr.mxu0 %v778
    %861 = vmatpush2.msra.mxu0 %v777
    %862 = vmatprep.subr.mxu0 %v775
    %863 = vmatpush2.msra.mxu0 %v774
    %864 = vmatprep.subr.mxu0 %v772
    %865 = vmatpush2.msra.mxu0 %v771
    %866 = vmatprep.subr.mxu0 %v769
    %867 = vmatpush2.msra.mxu0 %v768
    %868 = vmatprep.subr.mxu0 %v766
    %869 = vmatpush2.msra.mxu0 %v765
    %870 = vmatprep.subr.mxu0 %v763
    %871 = vmatpush2.msra.mxu0 %v762
    %872 = vmatprep.subr.mxu0 %v760
    %873 = vmatpush2.msra.mxu0 %v759
    %874 = vmatprep.subr.mxu0 %v757
    %875 = vmatpush2.msra.mxu0 %v756
    %876 = vmatprep.subr.mxu0 %v754
    %877 = vmatpush2.msra.mxu0 %v753
    %878 = vmatprep.subr.mxu0 %v751
    %879 = vmatpush2.msra.mxu0 %v750
    %880 = vmatprep.subr.mxu0 %v748
    %881 = vmatpush2.msra.mxu0 %v747
    %882 = vmatprep.subr.mxu0 %v745
    %883 = vmatpush2.msra.mxu0 %v744
    %884 = vmatprep.subr.mxu0 %v742
    %885 = vmatpush2.msra.mxu0 %v741
    %886 = vmatprep.subr.mxu0 %v739
    %887 = vmatpush2.msra.mxu0 %v738
    %888 = vmatprep.subr.mxu0 %v736
    %889 = vmatpush2.msra.mxu0 %v735
    %890 = vmatprep.subr.mxu0 %v733
    %891 = vmatpush2.msra.mxu0 %v732
    %892 = vmatprep.mubr.f32.mxu0 %v248
    %893 = vmatmul.mubr.f32.gmra.mxu0 %v587
    %v894 = vpop.f32.mrf.mxu0
    %v895 = vadd.f32 0.0, %v894
    %v896 = vpop.f32.mrf.mxu0
    %v897 = vadd.f32 0.0, %v896
    %898 = vmatprep.mubr.f32.mxu0 %v249
    %899 = vmatmul.mubr.f32.gmra.mxu0 %v588
    %v900 = vpop.f32.mrf.mxu0
    %v901 = vadd.f32 0.0, %v900
    %v902 = vpop.f32.mrf.mxu0
    %v903 = vadd.f32 0.0, %v902
    %904 = vmatprep.mubr.f32.mxu0 %v250
    %905 = vmatmul.mubr.f32.gmra.mxu0 %v589
    %v906 = vpop.f32.mrf.mxu0
    %v907 = vadd.f32 0.0, %v906
    %v908 = vpop.f32.mrf.mxu0
    %v909 = vadd.f32 0.0, %v908
    %910 = vmatprep.mubr.f32.mxu0 %v251
    %911 = vmatmul.mubr.f32.gmra.mxu0 %v590
    %v912 = vpop.f32.mrf.mxu0
    %v913 = vadd.f32 0.0, %v912
    %v914 = vpop.f32.mrf.mxu0
    %v915 = vadd.f32 0.0, %v914
    %916 = vmatprep.mubr.f32.mxu0 %v252
    %917 = vmatmul.mubr.f32.gmra.mxu0 %v591
    %v918 = vpop.f32.mrf.mxu0
    %v919 = vadd.f32 0.0, %v918
    %v920 = vpop.f32.mrf.mxu0
    %v921 = vadd.f32 0.0, %v920
    %922 = vmatprep.mubr.f32.mxu0 %v253
    %923 = vmatmul.mubr.f32.gmra.mxu0 %v592
    %v924 = vpop.f32.mrf.mxu0
    %v925 = vadd.f32 0.0, %v924
    %v926 = vpop.f32.mrf.mxu0
    %v927 = vadd.f32 0.0, %v926
    %928 = vmatprep.mubr.f32.mxu0 %v254
    %929 = vmatmul.mubr.f32.gmra.mxu0 %v593
    %v930 = vpop.f32.mrf.mxu0
    %v931 = vadd.f32 0.0, %v930
    %v932 = vpop.f32.mrf.mxu0
    %v933 = vadd.f32 0.0, %v932
    %934 = vmatprep.mubr.f32.mxu0 %v255
    %935 = vmatmul.mubr.f32.gmra.mxu0 %v594
    %v936 = vpop.f32.mrf.mxu0
    %v937 = vadd.f32 0.0, %v936
    %v938 = vpop.f32.mrf.mxu0
    %v939 = vadd.f32 0.0, %v938
    %940 = vmatprep.mubr.f32.mxu0 %v256
    %941 = vmatmul.mubr.f32.gmra.mxu0 %v595
    %v942 = vpop.f32.mrf.mxu0
    %v943 = vadd.f32 0.0, %v942
    %v944 = vpop.f32.mrf.mxu0
    %v945 = vadd.f32 0.0, %v944
    %946 = vmatprep.mubr.f32.mxu0 %v257
    %947 = vmatmul.mubr.f32.gmra.mxu0 %v596
    %v948 = vpop.f32.mrf.mxu0
    %v949 = vadd.f32 0.0, %v948
    %v950 = vpop.f32.mrf.mxu0
    %v951 = vadd.f32 0.0, %v950
    %952 = vmatprep.mubr.f32.mxu0 %v258
    %953 = vmatmul.mubr.f32.gmra.mxu0 %v597
    %v954 = vpop.f32.mrf.mxu0
    %v955 = vadd.f32 0.0, %v954
    %v956 = vpop.f32.mrf.mxu0
    %v957 = vadd.f32 0.0, %v956
    %958 = vmatprep.mubr.f32.mxu0 %v259
    %959 = vmatmul.mubr.f32.gmra.mxu0 %v598
    %v960 = vpop.f32.mrf.mxu0
    %v961 = vadd.f32 0.0, %v960
    %v962 = vpop.f32.mrf.mxu0
    %v963 = vadd.f32 0.0, %v962
    %964 = vmatprep.mubr.f32.mxu0 %v260
    %965 = vmatmul.mubr.f32.gmra.mxu0 %v599
    %v966 = vpop.f32.mrf.mxu0
    %v967 = vadd.f32 0.0, %v966
    %v968 = vpop.f32.mrf.mxu0
    %v969 = vadd.f32 0.0, %v968
    %970 = vmatprep.mubr.f32.mxu0 %v261
    %971 = vmatmul.mubr.f32.gmra.mxu0 %v600
    %v972 = vpop.f32.mrf.mxu0
    %v973 = vadd.f32 0.0, %v972
    %v974 = vpop.f32.mrf.mxu0
    %v975 = vadd.f32 0.0, %v974
    %976 = vmatprep.mubr.f32.mxu0 %v262
    %977 = vmatmul.mubr.f32.gmra.mxu0 %v601
    %v978 = vpop.f32.mrf.mxu0
    %v979 = vadd.f32 0.0, %v978
    %v980 = vpop.f32.mrf.mxu0
    %v981 = vadd.f32 0.0, %v980
    %982 = vmatprep.mubr.f32.mxu0 %v263
    %983 = vmatmul.mubr.f32.gmra.mxu0 %v602
    %v984 = vpop.f32.mrf.mxu0
    %v985 = vadd.f32 0.0, %v984
    %v986 = vpop.f32.mrf.mxu0
    %v987 = vadd.f32 0.0, %v986
    %988 = vdwg.mxu0
    %989 = vmatprep.subr.mxu0 %v826
    %990 = vmatpush1.msra.mxu0 %v825
    %991 = vmatprep.subr.mxu0 %v823
    %992 = vmatpush1.msra.mxu0 %v822
    %993 = vmatprep.subr.mxu0 %v820
    %994 = vmatpush1.msra.mxu0 %v819
    %995 = vmatprep.subr.mxu0 %v817
    %996 = vmatpush1.msra.mxu0 %v816
    %997 = vmatprep.subr.mxu0 %v814
    %998 = vmatpush1.msra.mxu0 %v813
    %999 = vmatprep.subr.mxu0 %v811
    %1000 = vmatpush1.msra.mxu0 %v810
    %1001 = vmatprep.subr.mxu0 %v808
    %1002 = vmatpush1.msra.mxu0 %v807
    %1003 = vmatprep.subr.mxu0 %v805
    %1004 = vmatpush1.msra.mxu0 %v804
    %1005 = vmatprep.subr.mxu0 %v802
    %1006 = vmatpush1.msra.mxu0 %v801
    %1007 = vmatprep.subr.mxu0 %v799
    %1008 = vmatpush1.msra.mxu0 %v798
    %1009 = vmatprep.subr.mxu0 %v796
    %1010 = vmatpush1.msra.mxu0 %v795
    %1011 = vmatprep.subr.mxu0 %v793
    %1012 = vmatpush1.msra.mxu0 %v792
    %1013 = vmatprep.subr.mxu0 %v790
    %1014 = vmatpush1.msra.mxu0 %v789
    %1015 = vmatprep.subr.mxu0 %v787
    %1016 = vmatpush1.msra.mxu0 %v786
    %1017 = vmatprep.subr.mxu0 %v784
    %1018 = vmatpush1.msra.mxu0 %v783
    %1019 = vmatprep.subr.mxu0 %v781
    %1020 = vmatpush1.msra.mxu0 %v780
    %1021 = vmatprep.subr.mxu0 0.0
    %1022 = vmatpush2.msra.mxu0 0.0
    %1023 = vmatprep.subr.mxu0 0.0
    %1024 = vmatpush2.msra.mxu0 0.0
    %1025 = vmatprep.subr.mxu0 0.0
    %1026 = vmatpush2.msra.mxu0 0.0
    %1027 = vmatprep.subr.mxu0 0.0
    %1028 = vmatpush2.msra.mxu0 0.0
    %1029 = vmatprep.subr.mxu0 0.0
    %1030 = vmatpush2.msra.mxu0 0.0
    %1031 = vmatprep.subr.mxu0 0.0
    %1032 = vmatpush2.msra.mxu0 0.0
    %1033 = vmatprep.subr.mxu0 0.0
    %1034 = vmatpush2.msra.mxu0 0.0
    %1035 = vmatprep.subr.mxu0 0.0
    %1036 = vmatpush2.msra.mxu0 0.0
    %1037 = vmatprep.subr.mxu0 0.0
    %1038 = vmatpush2.msra.mxu0 0.0
    %1039 = vmatprep.subr.mxu0 0.0
    %1040 = vmatpush2.msra.mxu0 0.0
    %1041 = vmatprep.subr.mxu0 0.0
    %1042 = vmatpush2.msra.mxu0 0.0
    %1043 = vmatprep.subr.mxu0 0.0
    %1044 = vmatpush2.msra.mxu0 0.0
    %1045 = vmatprep.subr.mxu0 0.0
    %1046 = vmatpush2.msra.mxu0 0.0
    %1047 = vmatprep.subr.mxu0 0.0
    %1048 = vmatpush2.msra.mxu0 0.0
    %1049 = vmatprep.subr.mxu0 0.0
    %1050 = vmatpush2.msra.mxu0 0.0
    %1051 = vmatprep.subr.mxu0 0.0
    %1052 = vmatpush2.msra.mxu0 0.0
    %1053 = vmatprep.mubr.f32.mxu0 0.0
    %1054 = vmatmul.mubr.f32.gmra.mxu0 %v668
    %v1055 = vpop.f32.mrf.mxu0
    %v1056 = vadd.f32 %v895, %v1055
    %v1057 = vpop.f32.mrf.mxu0
    %v1058 = vadd.f32 %v897, %v1057
    %1059 = vmatprep.mubr.f32.mxu0 0.0
    %1060 = vmatmul.mubr.f32.gmra.mxu0 %v669
    %v1061 = vpop.f32.mrf.mxu0
    %v1062 = vadd.f32 %v901, %v1061
    %v1063 = vpop.f32.mrf.mxu0
    %v1064 = vadd.f32 %v903, %v1063
    %1065 = vmatprep.mubr.f32.mxu0 0.0
    %1066 = vmatmul.mubr.f32.gmra.mxu0 %v670
    %v1067 = vpop.f32.mrf.mxu0
    %v1068 = vadd.f32 %v907, %v1067
    %v1069 = vpop.f32.mrf.mxu0
    %v1070 = vadd.f32 %v909, %v1069
    %1071 = vmatprep.mubr.f32.mxu0 0.0
    %1072 = vmatmul.mubr.f32.gmra.mxu0 %v671
    %v1073 = vpop.f32.mrf.mxu0
    %v1074 = vadd.f32 %v913, %v1073
    %v1075 = vpop.f32.mrf.mxu0
    %v1076 = vadd.f32 %v915, %v1075
    %1077 = vmatprep.mubr.f32.mxu0 0.0
    %1078 = vmatmul.mubr.f32.gmra.mxu0 %v672
    %v1079 = vpop.f32.mrf.mxu0
    %v1080 = vadd.f32 %v919, %v1079
    %v1081 = vpop.f32.mrf.mxu0
    %v1082 = vadd.f32 %v921, %v1081
    %1083 = vmatprep.mubr.f32.mxu0 0.0
    %1084 = vmatmul.mubr.f32.gmra.mxu0 %v673
    %v1085 = vpop.f32.mrf.mxu0
    %v1086 = vadd.f32 %v925, %v1085
    %v1087 = vpop.f32.mrf.mxu0
    %v1088 = vadd.f32 %v927, %v1087
    %1089 = vmatprep.mubr.f32.mxu0 0.0
    %1090 = vmatmul.mubr.f32.gmra.mxu0 %v674
    %v1091 = vpop.f32.mrf.mxu0
    %v1092 = vadd.f32 %v931, %v1091
    %v1093 = vpop.f32.mrf.mxu0
    %v1094 = vadd.f32 %v933, %v1093
    %1095 = vmatprep.mubr.f32.mxu0 0.0
    %1096 = vmatmul.mubr.f32.gmra.mxu0 %v675
    %v1097 = vpop.f32.mrf.mxu0
    %v1098 = vadd.f32 %v937, %v1097
    %v1099 = vpop.f32.mrf.mxu0
    %v1100 = vadd.f32 %v939, %v1099
    %1101 = vmatprep.mubr.f32.mxu0 0.0
    %1102 = vmatmul.mubr.f32.gmra.mxu0 %v676
    %v1103 = vpop.f32.mrf.mxu0
    %v1104 = vadd.f32 %v943, %v1103
    %v1105 = vpop.f32.mrf.mxu0
    %v1106 = vadd.f32 %v945, %v1105
    %1107 = vmatprep.mubr.f32.mxu0 0.0
    %1108 = vmatmul.mubr.f32.gmra.mxu0 %v677
    %v1109 = vpop.f32.mrf.mxu0
    %v1110 = vadd.f32 %v949, %v1109
    %v1111 = vpop.f32.mrf.mxu0
    %v1112 = vadd.f32 %v951, %v1111
    %1113 = vmatprep.mubr.f32.mxu0 0.0
    %1114 = vmatmul.mubr.f32.gmra.mxu0 %v678
    %v1115 = vpop.f32.mrf.mxu0
    %v1116 = vadd.f32 %v955, %v1115
    %v1117 = vpop.f32.mrf.mxu0
    %v1118 = vadd.f32 %v957, %v1117
    %1119 = vmatprep.mubr.f32.mxu0 0.0
    %1120 = vmatmul.mubr.f32.gmra.mxu0 %v679
    %v1121 = vpop.f32.mrf.mxu0
    %v1122 = vadd.f32 %v961, %v1121
    %v1123 = vpop.f32.mrf.mxu0
    %v1124 = vadd.f32 %v963, %v1123
    %1125 = vmatprep.mubr.f32.mxu0 0.0
    %1126 = vmatmul.mubr.f32.gmra.mxu0 %v680
    %v1127 = vpop.f32.mrf.mxu0
    %v1128 = vadd.f32 %v967, %v1127
    %v1129 = vpop.f32.mrf.mxu0
    %v1130 = vadd.f32 %v969, %v1129
    %1131 = vmatprep.mubr.f32.mxu0 0.0
    %1132 = vmatmul.mubr.f32.gmra.mxu0 %v681
    %v1133 = vpop.f32.mrf.mxu0
    %v1134 = vadd.f32 %v973, %v1133
    %v1135 = vpop.f32.mrf.mxu0
    %v1136 = vadd.f32 %v975, %v1135
    %1137 = vmatprep.mubr.f32.mxu0 0.0
    %1138 = vmatmul.mubr.f32.gmra.mxu0 %v682
    %v1139 = vpop.f32.mrf.mxu0
    %v1140 = vadd.f32 %v979, %v1139
    %v1141 = vpop.f32.mrf.mxu0
    %v1142 = vadd.f32 %v981, %v1141
    %1143 = vmatprep.mubr.f32.mxu0 0.0
    %1144 = vmatmul.mubr.f32.gmra.mxu0 %v683
    %v1145 = vpop.f32.mrf.mxu0
    %v1146 = vadd.f32 %v985, %v1145
    %v1147 = vpop.f32.mrf.mxu0
    %v1148 = vadd.f32 %v987, %v1147
    %1149 = vdwg.mxu0
    %1150 = vmatprep.subr.mxu0 0.0
    %1151 = vmatpush1.msra.mxu0 %v731
    %1152 = vmatprep.subr.mxu0 0.0
    %1153 = vmatpush1.msra.mxu0 %v728
    %1154 = vmatprep.subr.mxu0 0.0
    %1155 = vmatpush1.msra.mxu0 %v725
    %1156 = vmatprep.subr.mxu0 0.0
    %1157 = vmatpush1.msra.mxu0 %v722
    %1158 = vmatprep.subr.mxu0 0.0
    %1159 = vmatpush1.msra.mxu0 %v719
    %1160 = vmatprep.subr.mxu0 0.0
    %1161 = vmatpush1.msra.mxu0 %v716
    %1162 = vmatprep.subr.mxu0 0.0
    %1163 = vmatpush1.msra.mxu0 %v713
    %1164 = vmatprep.subr.mxu0 0.0
    %1165 = vmatpush1.msra.mxu0 %v710
    %1166 = vmatprep.subr.mxu0 0.0
    %1167 = vmatpush1.msra.mxu0 %v707
    %1168 = vmatprep.subr.mxu0 0.0
    %1169 = vmatpush1.msra.mxu0 %v704
    %1170 = vmatprep.subr.mxu0 0.0
    %1171 = vmatpush1.msra.mxu0 %v701
    %1172 = vmatprep.subr.mxu0 0.0
    %1173 = vmatpush1.msra.mxu0 %v698
    %1174 = vmatprep.subr.mxu0 0.0
    %1175 = vmatpush1.msra.mxu0 %v695
    %1176 = vmatprep.subr.mxu0 0.0
    %1177 = vmatpush1.msra.mxu0 %v692
    %1178 = vmatprep.subr.mxu0 0.0
    %1179 = vmatpush1.msra.mxu0 %v689
    %1180 = vmatprep.subr.mxu0 0.0
    %1181 = vmatpush1.msra.mxu0 %v686
    %1182 = vmatprep.subr.mxu0 0.0
    %1183 = vmatpush2.msra.mxu0 %v779
    %1184 = vmatprep.subr.mxu0 0.0
    %1185 = vmatpush2.msra.mxu0 %v776
    %1186 = vmatprep.subr.mxu0 0.0
    %1187 = vmatpush2.msra.mxu0 %v773
    %1188 = vmatprep.subr.mxu0 0.0
    %1189 = vmatpush2.msra.mxu0 %v770
    %1190 = vmatprep.subr.mxu0 0.0
    %1191 = vmatpush2.msra.mxu0 %v767
    %1192 = vmatprep.subr.mxu0 0.0
    %1193 = vmatpush2.msra.mxu0 %v764
    %1194 = vmatprep.subr.mxu0 0.0
    %1195 = vmatpush2.msra.mxu0 %v761
    %1196 = vmatprep.subr.mxu0 0.0
    %1197 = vmatpush2.msra.mxu0 %v758
    %1198 = vmatprep.subr.mxu0 0.0
    %1199 = vmatpush2.msra.mxu0 %v755
    %1200 = vmatprep.subr.mxu0 0.0
    %1201 = vmatpush2.msra.mxu0 %v752
    %1202 = vmatprep.subr.mxu0 0.0
    %1203 = vmatpush2.msra.mxu0 %v749
    %1204 = vmatprep.subr.mxu0 0.0
    %1205 = vmatpush2.msra.mxu0 %v746
    %1206 = vmatprep.subr.mxu0 0.0
    %1207 = vmatpush2.msra.mxu0 %v743
    %1208 = vmatprep.subr.mxu0 0.0
    %1209 = vmatpush2.msra.mxu0 %v740
    %1210 = vmatprep.subr.mxu0 0.0
    %1211 = vmatpush2.msra.mxu0 %v737
    %1212 = vmatprep.subr.mxu0 0.0
    %1213 = vmatpush2.msra.mxu0 %v734
    %1214 = vmatprep.mubr.f32.mxu0 %v248
    %1215 = vmatmul.mubr.f32.gmra.mxu0 %v587
    %v1216 = vpop.f32.mrf.mxu0
    %v1217 = vadd.f32 0.0, %v1216
    %v1218 = vpop.f32.mrf.mxu0
    %1219 = vmatprep.mubr.f32.mxu0 %v249
    %1220 = vmatmul.mubr.f32.gmra.mxu0 %v588
    %v1221 = vpop.f32.mrf.mxu0
    %v1222 = vadd.f32 0.0, %v1221
    %v1223 = vpop.f32.mrf.mxu0
    %1224 = vmatprep.mubr.f32.mxu0 %v250
    %1225 = vmatmul.mubr.f32.gmra.mxu0 %v589
    %v1226 = vpop.f32.mrf.mxu0
    %v1227 = vadd.f32 0.0, %v1226
    %v1228 = vpop.f32.mrf.mxu0
    %1229 = vmatprep.mubr.f32.mxu0 %v251
    %1230 = vmatmul.mubr.f32.gmra.mxu0 %v590
    %v1231 = vpop.f32.mrf.mxu0
    %v1232 = vadd.f32 0.0, %v1231
    %v1233 = vpop.f32.mrf.mxu0
    %1234 = vmatprep.mubr.f32.mxu0 %v252
    %1235 = vmatmul.mubr.f32.gmra.mxu0 %v591
    %v1236 = vpop.f32.mrf.mxu0
    %v1237 = vadd.f32 0.0, %v1236
    %v1238 = vpop.f32.mrf.mxu0
    %1239 = vmatprep.mubr.f32.mxu0 %v253
    %1240 = vmatmul.mubr.f32.gmra.mxu0 %v592
    %v1241 = vpop.f32.mrf.mxu0
    %v1242 = vadd.f32 0.0, %v1241
    %v1243 = vpop.f32.mrf.mxu0
    %1244 = vmatprep.mubr.f32.mxu0 %v254
    %1245 = vmatmul.mubr.f32.gmra.mxu0 %v593
    %v1246 = vpop.f32.mrf.mxu0
    %v1247 = vadd.f32 0.0, %v1246
    %v1248 = vpop.f32.mrf.mxu0
    %1249 = vmatprep.mubr.f32.mxu0 %v255
    %1250 = vmatmul.mubr.f32.gmra.mxu0 %v594
    %v1251 = vpop.f32.mrf.mxu0
    %v1252 = vadd.f32 0.0, %v1251
    %v1253 = vpop.f32.mrf.mxu0
    %1254 = vmatprep.mubr.f32.mxu0 %v256
    %1255 = vmatmul.mubr.f32.gmra.mxu0 %v595
    %v1256 = vpop.f32.mrf.mxu0
    %v1257 = vadd.f32 0.0, %v1256
    %v1258 = vpop.f32.mrf.mxu0
    %1259 = vmatprep.mubr.f32.mxu0 %v257
    %1260 = vmatmul.mubr.f32.gmra.mxu0 %v596
    %v1261 = vpop.f32.mrf.mxu0
    %v1262 = vadd.f32 0.0, %v1261
    %v1263 = vpop.f32.mrf.mxu0
    %1264 = vmatprep.mubr.f32.mxu0 %v258
    %1265 = vmatmul.mubr.f32.gmra.mxu0 %v597
    %v1266 = vpop.f32.mrf.mxu0
    %v1267 = vadd.f32 0.0, %v1266
    %v1268 = vpop.f32.mrf.mxu0
    %1269 = vmatprep.mubr.f32.mxu0 %v259
    %1270 = vmatmul.mubr.f32.gmra.mxu0 %v598
    %v1271 = vpop.f32.mrf.mxu0
    %v1272 = vadd.f32 0.0, %v1271
    %v1273 = vpop.f32.mrf.mxu0
    %1274 = vmatprep.mubr.f32.mxu0 %v260
    %1275 = vmatmul.mubr.f32.gmra.mxu0 %v599
    %v1276 = vpop.f32.mrf.mxu0
    %v1277 = vadd.f32 0.0, %v1276
    %v1278 = vpop.f32.mrf.mxu0
    %1279 = vmatprep.mubr.f32.mxu0 %v261
    %1280 = vmatmul.mubr.f32.gmra.mxu0 %v600
    %v1281 = vpop.f32.mrf.mxu0
    %v1282 = vadd.f32 0.0, %v1281
    %v1283 = vpop.f32.mrf.mxu0
    %1284 = vmatprep.mubr.f32.mxu0 %v262
    %1285 = vmatmul.mubr.f32.gmra.mxu0 %v601
    %v1286 = vpop.f32.mrf.mxu0
    %v1287 = vadd.f32 0.0, %v1286
    %v1288 = vpop.f32.mrf.mxu0
    %1289 = vmatprep.mubr.f32.mxu0 %v263
    %1290 = vmatmul.mubr.f32.gmra.mxu0 %v602
    %v1291 = vpop.f32.mrf.mxu0
    %v1292 = vadd.f32 0.0, %v1291
    %v1293 = vpop.f32.mrf.mxu0
    %1294 = vdwg.mxu0
    %1295 = vmatprep.subr.mxu0 0.0
    %1296 = vmatpush1.msra.mxu0 %v827
    %1297 = vmatprep.subr.mxu0 0.0
    %1298 = vmatpush1.msra.mxu0 %v824
    %1299 = vmatprep.subr.mxu0 0.0
    %1300 = vmatpush1.msra.mxu0 %v821
    %1301 = vmatprep.subr.mxu0 0.0
    %1302 = vmatpush1.msra.mxu0 %v818
    %1303 = vmatprep.subr.mxu0 0.0
    %1304 = vmatpush1.msra.mxu0 %v815
    %1305 = vmatprep.subr.mxu0 0.0
    %1306 = vmatpush1.msra.mxu0 %v812
    %1307 = vmatprep.subr.mxu0 0.0
    %1308 = vmatpush1.msra.mxu0 %v809
    %1309 = vmatprep.subr.mxu0 0.0
    %1310 = vmatpush1.msra.mxu0 %v806
    %1311 = vmatprep.subr.mxu0 0.0
    %1312 = vmatpush1.msra.mxu0 %v803
    %1313 = vmatprep.subr.mxu0 0.0
    %1314 = vmatpush1.msra.mxu0 %v800
    %1315 = vmatprep.subr.mxu0 0.0
    %1316 = vmatpush1.msra.mxu0 %v797
    %1317 = vmatprep.subr.mxu0 0.0
    %1318 = vmatpush1.msra.mxu0 %v794
    %1319 = vmatprep.subr.mxu0 0.0
    %1320 = vmatpush1.msra.mxu0 %v791
    %1321 = vmatprep.subr.mxu0 0.0
    %1322 = vmatpush1.msra.mxu0 %v788
    %1323 = vmatprep.subr.mxu0 0.0
    %1324 = vmatpush1.msra.mxu0 %v785
    %1325 = vmatprep.subr.mxu0 0.0
    %1326 = vmatpush1.msra.mxu0 %v782
    %1327 = vmatprep.subr.mxu0 0.0
    %1328 = vmatpush2.msra.mxu0 0.0
    %1329 = vmatprep.subr.mxu0 0.0
    %1330 = vmatpush2.msra.mxu0 0.0
    %1331 = vmatprep.subr.mxu0 0.0
    %1332 = vmatpush2.msra.mxu0 0.0
    %1333 = vmatprep.subr.mxu0 0.0
    %1334 = vmatpush2.msra.mxu0 0.0
    %1335 = vmatprep.subr.mxu0 0.0
    %1336 = vmatpush2.msra.mxu0 0.0
    %1337 = vmatprep.subr.mxu0 0.0
    %1338 = vmatpush2.msra.mxu0 0.0
    %1339 = vmatprep.subr.mxu0 0.0
    %1340 = vmatpush2.msra.mxu0 0.0
    %1341 = vmatprep.subr.mxu0 0.0
    %1342 = vmatpush2.msra.mxu0 0.0
    %1343 = vmatprep.subr.mxu0 0.0
    %1344 = vmatpush2.msra.mxu0 0.0
    %1345 = vmatprep.subr.mxu0 0.0
    %1346 = vmatpush2.msra.mxu0 0.0
    %1347 = vmatprep.subr.mxu0 0.0
    %1348 = vmatpush2.msra.mxu0 0.0
    %1349 = vmatprep.subr.mxu0 0.0
    %1350 = vmatpush2.msra.mxu0 0.0
    %1351 = vmatprep.subr.mxu0 0.0
    %1352 = vmatpush2.msra.mxu0 0.0
    %1353 = vmatprep.subr.mxu0 0.0
    %1354 = vmatpush2.msra.mxu0 0.0
    %1355 = vmatprep.subr.mxu0 0.0
    %1356 = vmatpush2.msra.mxu0 0.0
    %1357 = vmatprep.subr.mxu0 0.0
    %1358 = vmatpush2.msra.mxu0 0.0
    %1359 = vmatprep.mubr.f32.mxu0 0.0
    %1360 = vmatmul.mubr.f32.gmra.mxu0 %v668
    %v1361 = vpop.f32.mrf.mxu0
    %v1362 = vadd.f32 %v1217, %v1361
    %v1363 = vpop.f32.mrf.mxu0
    %1364 = vmatprep.mubr.f32.mxu0 0.0
    %1365 = vmatmul.mubr.f32.gmra.mxu0 %v669
    %v1366 = vpop.f32.mrf.mxu0
    %v1367 = vadd.f32 %v1222, %v1366
    %v1368 = vpop.f32.mrf.mxu0
    %1369 = vmatprep.mubr.f32.mxu0 0.0
    %1370 = vmatmul.mubr.f32.gmra.mxu0 %v670
    %v1371 = vpop.f32.mrf.mxu0
    %v1372 = vadd.f32 %v1227, %v1371
    %v1373 = vpop.f32.mrf.mxu0
    %1374 = vmatprep.mubr.f32.mxu0 0.0
    %1375 = vmatmul.mubr.f32.gmra.mxu0 %v671
    %v1376 = vpop.f32.mrf.mxu0
    %v1377 = vadd.f32 %v1232, %v1376
    %v1378 = vpop.f32.mrf.mxu0
    %1379 = vmatprep.mubr.f32.mxu0 0.0
    %1380 = vmatmul.mubr.f32.gmra.mxu0 %v672
    %v1381 = vpop.f32.mrf.mxu0
    %v1382 = vadd.f32 %v1237, %v1381
    %v1383 = vpop.f32.mrf.mxu0
    %1384 = vmatprep.mubr.f32.mxu0 0.0
    %1385 = vmatmul.mubr.f32.gmra.mxu0 %v673
    %v1386 = vpop.f32.mrf.mxu0
    %v1387 = vadd.f32 %v1242, %v1386
    %v1388 = vpop.f32.mrf.mxu0
    %1389 = vmatprep.mubr.f32.mxu0 0.0
    %1390 = vmatmul.mubr.f32.gmra.mxu0 %v674
    %v1391 = vpop.f32.mrf.mxu0
    %v1392 = vadd.f32 %v1247, %v1391
    %v1393 = vpop.f32.mrf.mxu0
    %1394 = vmatprep.mubr.f32.mxu0 0.0
    %1395 = vmatmul.mubr.f32.gmra.mxu0 %v675
    %v1396 = vpop.f32.mrf.mxu0
    %v1397 = vadd.f32 %v1252, %v1396
    %v1398 = vpop.f32.mrf.mxu0
    %1399 = vmatprep.mubr.f32.mxu0 0.0
    %1400 = vmatmul.mubr.f32.gmra.mxu0 %v676
    %v1401 = vpop.f32.mrf.mxu0
    %v1402 = vadd.f32 %v1257, %v1401
    %v1403 = vpop.f32.mrf.mxu0
    %1404 = vmatprep.mubr.f32.mxu0 0.0
    %1405 = vmatmul.mubr.f32.gmra.mxu0 %v677
    %v1406 = vpop.f32.mrf.mxu0
    %v1407 = vadd.f32 %v1262, %v1406
    %v1408 = vpop.f32.mrf.mxu0
    %1409 = vmatprep.mubr.f32.mxu0 0.0
    %1410 = vmatmul.mubr.f32.gmra.mxu0 %v678
    %v1411 = vpop.f32.mrf.mxu0
    %v1412 = vadd.f32 %v1267, %v1411
    %v1413 = vpop.f32.mrf.mxu0
    %1414 = vmatprep.mubr.f32.mxu0 0.0
    %1415 = vmatmul.mubr.f32.gmra.mxu0 %v679
    %v1416 = vpop.f32.mrf.mxu0
    %v1417 = vadd.f32 %v1272, %v1416
    %v1418 = vpop.f32.mrf.mxu0
    %1419 = vmatprep.mubr.f32.mxu0 0.0
    %1420 = vmatmul.mubr.f32.gmra.mxu0 %v680
    %v1421 = vpop.f32.mrf.mxu0
    %v1422 = vadd.f32 %v1277, %v1421
    %v1423 = vpop.f32.mrf.mxu0
    %1424 = vmatprep.mubr.f32.mxu0 0.0
    %1425 = vmatmul.mubr.f32.gmra.mxu0 %v681
    %v1426 = vpop.f32.mrf.mxu0
    %v1427 = vadd.f32 %v1282, %v1426
    %v1428 = vpop.f32.mrf.mxu0
    %1429 = vmatprep.mubr.f32.mxu0 0.0
    %1430 = vmatmul.mubr.f32.gmra.mxu0 %v682
    %v1431 = vpop.f32.mrf.mxu0
    %v1432 = vadd.f32 %v1287, %v1431
    %v1433 = vpop.f32.mrf.mxu0
    %1434 = vmatprep.mubr.f32.mxu0 0.0
    %1435 = vmatmul.mubr.f32.gmra.mxu0 %v683
    %v1436 = vpop.f32.mrf.mxu0
    %v1437 = vadd.f32 %v1292, %v1436
    %v1438 = vpop.f32.mrf.mxu0
    %1439 = vdwg.mxu0
    %v1440 = vsel %vm490, 1, 0
    %v1441 = vsel %vm491, 1, 0
    %v1442 = vsel %vm492, 1, 0
    %v1443 = vsel %vm493, 1, 0
    %v1444 = vsel %vm494, 1, 0
    %v1445 = vsel %vm495, 1, 0
    %v1446 = vsel %vm496, 1, 0
    %v1447 = vsel %vm497, 1, 0
    %v1448 = vsel %vm498, 1, 0
    %v1449 = vsel %vm499, 1, 0
    %v1450 = vsel %vm500, 1, 0
    %v1451 = vsel %vm501, 1, 0
    %v1452 = vsel %vm502, 1, 0
    %v1453 = vsel %vm503, 1, 0
    %v1454 = vsel %vm504, 1, 0
    %v1455 = vsel %vm505, 1, 0
    %vm1456 = vcmp.eq.s32.totalorder %v1440, 1
    %vm1457 = vcmp.eq.s32.totalorder %v1441, 1
    %vm1458 = vcmp.eq.s32.totalorder %v1442, 1
    %vm1459 = vcmp.eq.s32.totalorder %v1443, 1
    %vm1460 = vcmp.eq.s32.totalorder %v1444, 1
    %vm1461 = vcmp.eq.s32.totalorder %v1445, 1
    %vm1462 = vcmp.eq.s32.totalorder %v1446, 1
    %vm1463 = vcmp.eq.s32.totalorder %v1447, 1
    %vm1464 = vcmp.eq.s32.totalorder %v1448, 1
    %vm1465 = vcmp.eq.s32.totalorder %v1449, 1
    %vm1466 = vcmp.eq.s32.totalorder %v1450, 1
    %vm1467 = vcmp.eq.s32.totalorder %v1451, 1
    %vm1468 = vcmp.eq.s32.totalorder %v1452, 1
    %vm1469 = vcmp.eq.s32.totalorder %v1453, 1
    %vm1470 = vcmp.eq.s32.totalorder %v1454, 1
    %vm1471 = vcmp.eq.s32.totalorder %v1455, 1
    %v1472 = vsel %vm1456, 0.0, %v1146
    %v1473 = vsel %vm1457, 0.0, %v1056
    %v1474 = vsel %vm1458, 0.0, %v1062
    %v1475 = vsel %vm1459, 0.0, %v1068
    %v1476 = vsel %vm1460, 0.0, %v1074
    %v1477 = vsel %vm1461, 0.0, %v1080
    %v1478 = vsel %vm1462, 0.0, %v1086
    %v1479 = vsel %vm1463, 0.0, %v1092
    %v1480 = vsel %vm1464, 0.0, %v1098
    %v1481 = vsel %vm1465, 0.0, %v1104
    %v1482 = vsel %vm1466, 0.0, %v1110
    %v1483 = vsel %vm1467, 0.0, %v1116
    %v1484 = vsel %vm1468, 0.0, %v1122
    %v1485 = vsel %vm1469, 0.0, %v1128
    %v1486 = vsel %vm1470, 0.0, %v1134
    %v1487 = vsel %vm1471, 0.0, %v1140
    %v1488 = vadd.f32 %v1058, %v1472
    %v1489 = vadd.f32 %v1064, %v1473
    %v1490 = vadd.f32 %v1070, %v1474
    %v1491 = vadd.f32 %v1076, %v1475
    %v1492 = vadd.f32 %v1082, %v1476
    %v1493 = vadd.f32 %v1088, %v1477
    %v1494 = vadd.f32 %v1094, %v1478
    %v1495 = vadd.f32 %v1100, %v1479
    %v1496 = vadd.f32 %v1106, %v1480
    %v1497 = vadd.f32 %v1112, %v1481
    %v1498 = vadd.f32 %v1118, %v1482
    %v1499 = vadd.f32 %v1124, %v1483
    %v1500 = vadd.f32 %v1130, %v1484
    %v1501 = vadd.f32 %v1136, %v1485
    %v1502 = vadd.f32 %v1142, %v1486
    %v1503 = vadd.f32 %v1148, %v1487
    %v1504 = vsel %vm506, 1, 0
    %v1505 = vsel %vm507, 1, 0
    %v1506 = vsel %vm508, 1, 0
    %v1507 = vsel %vm509, 1, 0
    %v1508 = vsel %vm510, 1, 0
    %v1509 = vsel %vm511, 1, 0
    %v1510 = vsel %vm512, 1, 0
    %v1511 = vsel %vm513, 1, 0
    %v1512 = vsel %vm514, 1, 0
    %v1513 = vsel %vm515, 1, 0
    %v1514 = vsel %vm516, 1, 0
    %v1515 = vsel %vm517, 1, 0
    %v1516 = vsel %vm518, 1, 0
    %v1517 = vsel %vm519, 1, 0
    %v1518 = vsel %vm520, 1, 0
    %v1519 = vsel %vm521, 1, 0
    %vm1520 = vcmp.eq.s32.totalorder %v1504, 1
    %vm1521 = vcmp.eq.s32.totalorder %v1505, 1
    %vm1522 = vcmp.eq.s32.totalorder %v1506, 1
    %vm1523 = vcmp.eq.s32.totalorder %v1507, 1
    %vm1524 = vcmp.eq.s32.totalorder %v1508, 1
    %vm1525 = vcmp.eq.s32.totalorder %v1509, 1
    %vm1526 = vcmp.eq.s32.totalorder %v1510, 1
    %vm1527 = vcmp.eq.s32.totalorder %v1511, 1
    %vm1528 = vcmp.eq.s32.totalorder %v1512, 1
    %vm1529 = vcmp.eq.s32.totalorder %v1513, 1
    %vm1530 = vcmp.eq.s32.totalorder %v1514, 1
    %vm1531 = vcmp.eq.s32.totalorder %v1515, 1
    %vm1532 = vcmp.eq.s32.totalorder %v1516, 1
    %vm1533 = vcmp.eq.s32.totalorder %v1517, 1
    %vm1534 = vcmp.eq.s32.totalorder %v1518, 1
    %vm1535 = vcmp.eq.s32.totalorder %v1519, 1
    %v1536 = vsel %vm1520, 0.0, %v1367
    %v1537 = vsel %vm1521, 0.0, %v1372
    %v1538 = vsel %vm1522, 0.0, %v1377
    %v1539 = vsel %vm1523, 0.0, %v1382
    %v1540 = vsel %vm1524, 0.0, %v1387
    %v1541 = vsel %vm1525, 0.0, %v1392
    %v1542 = vsel %vm1526, 0.0, %v1397
    %v1543 = vsel %vm1527, 0.0, %v1402
    %v1544 = vsel %vm1528, 0.0, %v1407
    %v1545 = vsel %vm1529, 0.0, %v1412
    %v1546 = vsel %vm1530, 0.0, %v1417
    %v1547 = vsel %vm1531, 0.0, %v1422
    %v1548 = vsel %vm1532, 0.0, %v1427
    %v1549 = vsel %vm1533, 0.0, %v1432
    %v1550 = vsel %vm1534, 0.0, %v1437
    %v1551 = vsel %vm1535, 0.0, %v1362
    %v1552 = vadd.f32 %v1488, %v1536
    %v1553 = vadd.f32 %v1489, %v1537
    %v1554 = vadd.f32 %v1490, %v1538
    %v1555 = vadd.f32 %v1491, %v1539
    %v1556 = vadd.f32 %v1492, %v1540
    %v1557 = vadd.f32 %v1493, %v1541
    %v1558 = vadd.f32 %v1494, %v1542
    %v1559 = vadd.f32 %v1495, %v1543
    %v1560 = vadd.f32 %v1496, %v1544
    %v1561 = vadd.f32 %v1497, %v1545
    %v1562 = vadd.f32 %v1498, %v1546
    %v1563 = vadd.f32 %v1499, %v1547
    %v1564 = vadd.f32 %v1500, %v1548
    %v1565 = vadd.f32 %v1501, %v1549
    %v1566 = vadd.f32 %v1502, %v1550
    %v1567 = vadd.f32 %v1503, %v1551
    %v1568 = vld [vmem:[%s4] sm:$0x1]
    %v1570 = vlaneseq
    %v1571 = vshrl.u32 %v1570, 7
    %v1572 = vsub.s32 0, %v1571
    %v1573 = vrot.slane %v1568, %v1572
    %v1575 = vadd.f32 %v1552, %v1573
    %v1576 = vadd.f32 %v1553, %v1573
    %v1577 = vadd.f32 %v1554, %v1573
    %v1578 = vadd.f32 %v1555, %v1573
    %v1579 = vadd.f32 %v1556, %v1573
    %v1580 = vadd.f32 %v1557, %v1573
    %v1581 = vadd.f32 %v1558, %v1573
    %v1582 = vadd.f32 %v1559, %v1573
    %v1583 = vadd.f32 %v1560, %v1573
    %v1584 = vadd.f32 %v1561, %v1573
    %v1585 = vadd.f32 %v1562, %v1573
    %v1586 = vadd.f32 %v1563, %v1573
    %v1587 = vadd.f32 %v1564, %v1573
    %v1588 = vadd.f32 %v1565, %v1573
    %v1589 = vadd.f32 %v1566, %v1573
    %v1590 = vadd.f32 %v1567, %v1573
    %v1591 = vmax.f32 %v1575, 0.0
    %v1592 = vmax.f32 %v1576, 0.0
    %v1593 = vmax.f32 %v1577, 0.0
    %v1594 = vmax.f32 %v1578, 0.0
    %v1595 = vmax.f32 %v1579, 0.0
    %v1596 = vmax.f32 %v1580, 0.0
    %v1597 = vmax.f32 %v1581, 0.0
    %v1598 = vmax.f32 %v1582, 0.0
    %v1599 = vmax.f32 %v1583, 0.0
    %v1600 = vmax.f32 %v1584, 0.0
    %v1601 = vmax.f32 %v1585, 0.0
    %v1602 = vmax.f32 %v1586, 0.0
    %v1603 = vmax.f32 %v1587, 0.0
    %v1604 = vmax.f32 %v1588, 0.0
    %v1605 = vmax.f32 %v1589, 0.0
    %v1606 = vmax.f32 %v1590, 0.0
    %v1607 = vld [vmem:[%s5] sm:$0xff]
    %v1608 = vld [vmem:[%s5 + $0x8] sm:$0xff]
    %v1609 = vld [vmem:[%s5 + $0x10] sm:$0xff]
    %v1610 = vld [vmem:[%s5 + $0x18] sm:$0xff]
    %v1611 = vld [vmem:[%s5 + $0x20] sm:$0xff]
    %v1612 = vld [vmem:[%s5 + $0x28] sm:$0xff]
    %v1613 = vld [vmem:[%s5 + $0x30] sm:$0xff]
    %v1614 = vld [vmem:[%s5 + $0x38] sm:$0xff]
    %v1615 = vld [vmem:[%s5 + $0x40] sm:$0xff]
    %v1616 = vld [vmem:[%s5 + $0x48] sm:$0xff]
    %v1617 = vld [vmem:[%s5 + $0x50] sm:$0xff]
    %v1618 = vld [vmem:[%s5 + $0x58] sm:$0xff]
    %v1619 = vld [vmem:[%s5 + $0x60] sm:$0xff]
    %v1620 = vld [vmem:[%s5 + $0x68] sm:$0xff]
    %v1621 = vld [vmem:[%s5 + $0x70] sm:$0xff]
    %v1622 = vld [vmem:[%s5 + $0x78] sm:$0xff]
    %v1623 = vld [vmem:[%s6] sm:$0x1]
    %v1625 = vlaneseq
    %v1626 = vshrl.u32 %v1625, 7
    %v1627 = vsub.s32 0, %v1626
    %v1628 = vrot.slane %v1623, %v1627
    %1630 = vmatprep.subr.mxu0 0.0
    %1631 = vmatpush1.msra.mxu0 %v1622
    %1632 = vmatprep.subr.mxu0 0.0
    %1633 = vmatpush1.msra.mxu0 %v1621
    %1634 = vmatprep.subr.mxu0 0.0
    %1635 = vmatpush1.msra.mxu0 %v1620
    %1636 = vmatprep.subr.mxu0 0.0
    %1637 = vmatpush1.msra.mxu0 %v1619
    %1638 = vmatprep.subr.mxu0 0.0
    %1639 = vmatpush1.msra.mxu0 %v1618
    %1640 = vmatprep.subr.mxu0 0.0
    %1641 = vmatpush1.msra.mxu0 %v1617
    %1642 = vmatprep.subr.mxu0 0.0
    %1643 = vmatpush1.msra.mxu0 %v1616
    %1644 = vmatprep.subr.mxu0 0.0
    %1645 = vmatpush1.msra.mxu0 %v1615
    %1646 = vmatprep.subr.mxu0 0.0
    %1647 = vmatpush1.msra.mxu0 %v1614
    %1648 = vmatprep.subr.mxu0 0.0
    %1649 = vmatpush1.msra.mxu0 %v1613
    %1650 = vmatprep.subr.mxu0 0.0
    %1651 = vmatpush1.msra.mxu0 %v1612
    %1652 = vmatprep.subr.mxu0 0.0
    %1653 = vmatpush1.msra.mxu0 %v1611
    %1654 = vmatprep.subr.mxu0 0.0
    %1655 = vmatpush1.msra.mxu0 %v1610
    %1656 = vmatprep.subr.mxu0 0.0
    %1657 = vmatpush1.msra.mxu0 %v1609
    %1658 = vmatprep.subr.mxu0 0.0
    %1659 = vmatpush1.msra.mxu0 %v1608
    %1660 = vmatprep.subr.mxu0 0.0
    %1661 = vmatpush1.msra.mxu0 %v1607
    %1662 = vmatprep.subr.mxu0 0.0
    %1663 = vmatpush2.msra.mxu0 0.0
    %1664 = vmatprep.subr.mxu0 0.0
    %1665 = vmatpush2.msra.mxu0 0.0
    %1666 = vmatprep.subr.mxu0 0.0
    %1667 = vmatpush2.msra.mxu0 0.0
    %1668 = vmatprep.subr.mxu0 0.0
    %1669 = vmatpush2.msra.mxu0 0.0
    %1670 = vmatprep.subr.mxu0 0.0
    %1671 = vmatpush2.msra.mxu0 0.0
    %1672 = vmatprep.subr.mxu0 0.0
    %1673 = vmatpush2.msra.mxu0 0.0
    %1674 = vmatprep.subr.mxu0 0.0
    %1675 = vmatpush2.msra.mxu0 0.0
    %1676 = vmatprep.subr.mxu0 0.0
    %1677 = vmatpush2.msra.mxu0 0.0
    %1678 = vmatprep.subr.mxu0 0.0
    %1679 = vmatpush2.msra.mxu0 0.0
    %1680 = vmatprep.subr.mxu0 0.0
    %1681 = vmatpush2.msra.mxu0 0.0
    %1682 = vmatprep.subr.mxu0 0.0
    %1683 = vmatpush2.msra.mxu0 0.0
    %1684 = vmatprep.subr.mxu0 0.0
    %1685 = vmatpush2.msra.mxu0 0.0
    %1686 = vmatprep.subr.mxu0 0.0
    %1687 = vmatpush2.msra.mxu0 0.0
    %1688 = vmatprep.subr.mxu0 0.0
    %1689 = vmatpush2.msra.mxu0 0.0
    %1690 = vmatprep.subr.mxu0 0.0
    %1691 = vmatpush2.msra.mxu0 0.0
    %1692 = vmatprep.subr.mxu0 0.0
    %1693 = vmatpush2.msra.mxu0 0.0
    %1694 = vmatprep.mubr.f32.mxu0 0.0
    %1695 = vmatmul.mubr.f32.gmra.mxu0 %v1591
    %v1696 = vpop.f32.mrf.mxu0
    %v1697 = vadd.f32 %v1628, %v1696
    %v1698 = vpop.f32.mrf.mxu0
    %1699 = vmatprep.mubr.f32.mxu0 0.0
    %1700 = vmatmul.mubr.f32.gmra.mxu0 %v1592
    %v1701 = vpop.f32.mrf.mxu0
    %v1702 = vadd.f32 %v1628, %v1701
    %v1703 = vpop.f32.mrf.mxu0
    %1704 = vmatprep.mubr.f32.mxu0 0.0
    %1705 = vmatmul.mubr.f32.gmra.mxu0 %v1593
    %v1706 = vpop.f32.mrf.mxu0
    %v1707 = vadd.f32 %v1628, %v1706
    %v1708 = vpop.f32.mrf.mxu0
    %1709 = vmatprep.mubr.f32.mxu0 0.0
    %1710 = vmatmul.mubr.f32.gmra.mxu0 %v1594
    %v1711 = vpop.f32.mrf.mxu0
    %v1712 = vadd.f32 %v1628, %v1711
    %v1713 = vpop.f32.mrf.mxu0
    %1714 = vmatprep.mubr.f32.mxu0 0.0
    %1715 = vmatmul.mubr.f32.gmra.mxu0 %v1595
    %v1716 = vpop.f32.mrf.mxu0
    %v1717 = vadd.f32 %v1628, %v1716
    %v1718 = vpop.f32.mrf.mxu0
    %1719 = vmatprep.mubr.f32.mxu0 0.0
    %1720 = vmatmul.mubr.f32.gmra.mxu0 %v1596
    %v1721 = vpop.f32.mrf.mxu0
    %v1722 = vadd.f32 %v1628, %v1721
    %v1723 = vpop.f32.mrf.mxu0
    %1724 = vmatprep.mubr.f32.mxu0 0.0
    %1725 = vmatmul.mubr.f32.gmra.mxu0 %v1597
    %v1726 = vpop.f32.mrf.mxu0
    %v1727 = vadd.f32 %v1628, %v1726
    %v1728 = vpop.f32.mrf.mxu0
    %1729 = vmatprep.mubr.f32.mxu0 0.0
    %1730 = vmatmul.mubr.f32.gmra.mxu0 %v1598
    %v1731 = vpop.f32.mrf.mxu0
    %v1732 = vadd.f32 %v1628, %v1731
    %v1733 = vpop.f32.mrf.mxu0
    %1734 = vmatprep.mubr.f32.mxu0 0.0
    %1735 = vmatmul.mubr.f32.gmra.mxu0 %v1599
    %v1736 = vpop.f32.mrf.mxu0
    %v1737 = vadd.f32 %v1628, %v1736
    %v1738 = vpop.f32.mrf.mxu0
    %1739 = vmatprep.mubr.f32.mxu0 0.0
    %1740 = vmatmul.mubr.f32.gmra.mxu0 %v1600
    %v1741 = vpop.f32.mrf.mxu0
    %v1742 = vadd.f32 %v1628, %v1741
    %v1743 = vpop.f32.mrf.mxu0
    %1744 = vmatprep.mubr.f32.mxu0 0.0
    %1745 = vmatmul.mubr.f32.gmra.mxu0 %v1601
    %v1746 = vpop.f32.mrf.mxu0
    %v1747 = vadd.f32 %v1628, %v1746
    %v1748 = vpop.f32.mrf.mxu0
    %1749 = vmatprep.mubr.f32.mxu0 0.0
    %1750 = vmatmul.mubr.f32.gmra.mxu0 %v1602
    %v1751 = vpop.f32.mrf.mxu0
    %v1752 = vadd.f32 %v1628, %v1751
    %v1753 = vpop.f32.mrf.mxu0
    %1754 = vmatprep.mubr.f32.mxu0 0.0
    %1755 = vmatmul.mubr.f32.gmra.mxu0 %v1603
    %v1756 = vpop.f32.mrf.mxu0
    %v1757 = vadd.f32 %v1628, %v1756
    %v1758 = vpop.f32.mrf.mxu0
    %1759 = vmatprep.mubr.f32.mxu0 0.0
    %1760 = vmatmul.mubr.f32.gmra.mxu0 %v1604
    %v1761 = vpop.f32.mrf.mxu0
    %v1762 = vadd.f32 %v1628, %v1761
    %v1763 = vpop.f32.mrf.mxu0
    %1764 = vmatprep.mubr.f32.mxu0 0.0
    %1765 = vmatmul.mubr.f32.gmra.mxu0 %v1605
    %v1766 = vpop.f32.mrf.mxu0
    %v1767 = vadd.f32 %v1628, %v1766
    %v1768 = vpop.f32.mrf.mxu0
    %1769 = vmatprep.mubr.f32.mxu0 0.0
    %1770 = vmatmul.mubr.f32.gmra.mxu0 %v1606
    %v1771 = vpop.f32.mrf.mxu0
    %v1772 = vadd.f32 %v1628, %v1771
    %v1773 = vpop.f32.mrf.mxu0
    %1774 = vdwg.mxu0
    %v1775 = vadd.f32 %v1697, %v156
    %v1776 = vadd.f32 %v1702, %v162
    %v1777 = vadd.f32 %v1707, %v168
    %v1778 = vadd.f32 %v1712, %v174
    %v1779 = vadd.f32 %v1717, %v180
    %v1780 = vadd.f32 %v1722, %v186
    %v1781 = vadd.f32 %v1727, %v192
    %v1782 = vadd.f32 %v1732, %v198
    %v1783 = vadd.f32 %v1737, %v204
    %v1784 = vadd.f32 %v1742, %v210
    %v1785 = vadd.f32 %v1747, %v216
    %v1786 = vadd.f32 %v1752, %v222
    %v1787 = vadd.f32 %v1757, %v228
    %v1788 = vadd.f32 %v1762, %v234
    %v1789 = vadd.f32 %v1767, %v240
    %v1790 = vadd.f32 %v1772, %v246
    %v1791 = vmax.f32 %v1775, 0.0
    %v1792 = vmax.f32 %v1776, 0.0
    %v1793 = vmax.f32 %v1777, 0.0
    %v1794 = vmax.f32 %v1778, 0.0
    %v1795 = vmax.f32 %v1779, 0.0
    %v1796 = vmax.f32 %v1780, 0.0
    %v1797 = vmax.f32 %v1781, 0.0
    %v1798 = vmax.f32 %v1782, 0.0
    %v1799 = vmax.f32 %v1783, 0.0
    %v1800 = vmax.f32 %v1784, 0.0
    %v1801 = vmax.f32 %v1785, 0.0
    %v1802 = vmax.f32 %v1786, 0.0
    %v1803 = vmax.f32 %v1787, 0.0
    %v1804 = vmax.f32 %v1788, 0.0
    %v1805 = vmax.f32 %v1789, 0.0
    %v1806 = vmax.f32 %v1790, 0.0
    %1807 = vst [vmem:[#allocation2] sm:$0xff] %v1791
    %1808 = vst [vmem:[#allocation2 + $0x8] sm:$0xff] %v1792
    %1809 = vst [vmem:[#allocation2 + $0x10] sm:$0xff] %v1793
    %1810 = vst [vmem:[#allocation2 + $0x18] sm:$0xff] %v1794
    %1811 = vst [vmem:[#allocation2 + $0x20] sm:$0xff] %v1795
    %1812 = vst [vmem:[#allocation2 + $0x28] sm:$0xff] %v1796
    %1813 = vst [vmem:[#allocation2 + $0x30] sm:$0xff] %v1797
    %1814 = vst [vmem:[#allocation2 + $0x38] sm:$0xff] %v1798
    %1815 = vst [vmem:[#allocation2 + $0x40] sm:$0xff] %v1799
    %1816 = vst [vmem:[#allocation2 + $0x48] sm:$0xff] %v1800
    %1817 = vst [vmem:[#allocation2 + $0x50] sm:$0xff] %v1801
    %1818 = vst [vmem:[#allocation2 + $0x58] sm:$0xff] %v1802
    %1819 = vst [vmem:[#allocation2 + $0x60] sm:$0xff] %v1803
    %1820 = vst [vmem:[#allocation2 + $0x68] sm:$0xff] %v1804
    %1821 = vst [vmem:[#allocation2 + $0x70] sm:$0xff] %v1805
    %1822 = vst [vmem:[#allocation2 + $0x78] sm:$0xff] %v1806
    // Predicated region
    $region30: #{bottleneck_forward.1} parent=1 // pred_check
      _
    $region31: #{bottleneck_forward.1} parent=1 // pred_check_branch
      %1824 = sbr.rel (0) target = $region33
    $region32: #{bottleneck_forward.1} parent=1 // pred_region
      %s1826 = ssub.s32 2048, 2048
      %1827 = vsyncadd [#allocation3], %s1826
      %s1828 = sshll.u32 [#allocation2], 4
      %s1829 = int_to_ptr.vmem [resolvable:$true] %s1828
      %1834 = dma.vmem_to_hbm [thread:$0]  %s1829, 2048, %s7, [#allocation3], 128, 128, 8
    $region33: #{bottleneck_forward.1} parent=1 // pred_fallthru
      _
    // Predicated region
    $region34: #{bottleneck_forward.1} parent=1 // pred_check
      _
    $region35: #{bottleneck_forward.1} parent=1 // pred_check_branch
      %1836 = sbr.rel (0) target = $region37
    $region36: #{bottleneck_forward.1} parent=1 // pred_region
      %1837 = dma.done [#allocation3], 2048
    $region37: #{bottleneck_forward.1} parent=1 // pred_fallthru
      _
    %1838 = vsyncpa [#allocation3], 1

</llo_original>
